<compile_context>
chip_gen: v7x
topology: tpu7x:2x2x1
jax: 0.10.0
libtpu: 0.0.40
codegen_flags: <defaults>
</compile_context>

<pallas_src>
import functools

import jax
import jax.numpy as jnp
from jax.experimental import pallas as pl
from jax.experimental.pallas import tpu as pltpu


# ---------------------------------------------------------------------------
# Kernel
# ---------------------------------------------------------------------------
def birnn_kernel(gi_ref,     # (chunk, B, 3*Hp) f32  precomputed input proj.
                 whh_ref,    # (Hp, 3*Hp)       bf16 per-direction recurrent W
                 bhn_ref,    # (B, Hp)          f32  pre-broadcast n-gate bias
                 out_ref,    # (B, Hp)          f32  this direction's final h
                 h_ref,      # (B, Hp)          f32  persistent hidden scratch
                 *, chunk, hp):
    c = pl.program_id(1)                       # time-chunk index

    # Initialize the hidden carry at the start of each direction's recurrence.
    @pl.when(c == 0)
    def _init():
        h_ref[...] = jnp.zeros_like(h_ref)

    whh = whh_ref[...]                          # hoisted out of the loop
    bhn = bhn_ref[...]
    h0 = h_ref[...]                             # (B, Hp) f32 carry

    def step(s, h):
        g = gi_ref[s]                                        # (B, 3Hp) f32
        # bf16 operands, explicit f32 accumulation (single MXU pass).
        gh = jnp.dot(h.astype(jnp.bfloat16), whh,
                     preferred_element_type=jnp.float32)     # (B, 3Hp) f32
        rz = jax.nn.sigmoid(g[:, :2 * hp] + gh[:, :2 * hp])
        r = rz[:, :hp]
        z = rz[:, hp:]
        n = jnp.tanh(g[:, 2 * hp:] + r * (gh[:, 2 * hp:] + bhn))
        return n + z * (h - n)                  # == (1-z)*n + z*h, one VALU op less

    h = jax.lax.fori_loop(0, chunk, step, h0, unroll=True)
    h_ref[...] = h

    @pl.when(c == pl.num_programs(1) - 1)
    def _finalize():
        out_ref[...] = h                        # single lane-dense (B,Hp) store


# ---------------------------------------------------------------------------
# Host-side packing / wrapper
# ---------------------------------------------------------------------------
def _pack_params(params, Hp):
    """Pack PyTorch-layout GRU params into lane-aligned per-direction arrays.

    Per direction d (0=forward, 1=backward), gate column layout is
    [r | z | n], each block Hp lanes wide (only the first H columns of a block
    are populated; padded lanes stay exactly zero through the recurrence).
    """
    H = params["w_hh_f"].shape[1]
    D = params["w_ih_f"].shape[1]
    assert Hp % 128 == 0 and Hp >= H            # lane-aligned gate blocks

    wi = jnp.zeros((2, D, 3 * Hp), jnp.float32)    # input projection weights
    gib = jnp.zeros((2, 3 * Hp), jnp.float32)      # folded biases
    whh = jnp.zeros((2, Hp, 3 * Hp), jnp.float32)  # recurrent weights
    bhn = jnp.zeros((2, Hp), jnp.float32)          # n-gate recurrent bias

    for d, sfx in enumerate(("f", "b")):           # 0 = forward, 1 = backward
        w_ih = params[f"w_ih_{sfx}"]               # (3H, D), gates [r; z; n]
        w_hh = params[f"w_hh_{sfx}"]               # (3H, H)
        b_ih = params[f"b_ih_{sfx}"]               # (3H,)
        b_hh = params[f"b_hh_{sfx}"]               # (3H,)
        for g in range(3):                         # 0=r, 1=z, 2=n
            col = g * Hp
            wi = wi.at[d, :, col:col + H].set(w_ih[g * H:(g + 1) * H, :].T)
            b = b_ih[g * H:(g + 1) * H]
            if g < 2:                              # fold b_hh for r and z
                b = b + b_hh[g * H:(g + 1) * H]
            gib = gib.at[d, col:col + H].set(b)
            whh = whh.at[d, :H, col:col + H].set(w_hh[g * H:(g + 1) * H, :].T)
        bhn = bhn.at[d, :H].set(b_hh[2 * H:3 * H])

    # bf16 recurrent weights: MXU-native operands, half the VMEM->vreg traffic.
    return wi, gib, whh.astype(jnp.bfloat16), bhn


def birnn_forward(x, params):
    """x: (B, T, D) float32; returns (B, 2H) float32 = [h_fwd | h_bwd]."""
    B, T, D = x.shape
    H = params["w_hh_f"].shape[1]
    Hp = pl.cdiv(H, 128) * 128                   # lane-aligned hidden width

    # Two time chunks when possible (one pipeline stage of gi DMA/compute
    # overlap); a single chunk for odd T.  T % chunk == 0 always holds.
    chunk = T // 2 if (T % 2 == 0 and T >= 2) else T
    nc = T // chunk

    wi, gib, whh, bhn = _pack_params(params, Hp)

    # One fused input projection for both directions; the backward direction
    # consumes the time-reversed input so the kernel's chunk order is natural.
    xs = jnp.stack([x, x[:, ::-1, :]]).astype(jnp.float32)        # (2, B, T, D)
    gi = jnp.einsum("ebtd,edg->etbg", xs, wi,
                    preferred_element_type=jnp.float32)           # (2, T, B, 3Hp)
    gi = gi + gib[:, None, None, :]
    bhn_b = jnp.broadcast_to(bhn[:, None, :], (2, B, Hp))         # once, on host

    kernel = functools.partial(birnn_kernel, chunk=chunk, hp=Hp)
    out = pl.pallas_call(
        kernel,
        out_shape=jax.ShapeDtypeStruct((B, 2 * Hp), jnp.float32),
        grid=(2, nc),                            # (direction, time-chunk)
        in_specs=[
            pl.BlockSpec((None, chunk, B, 3 * Hp), lambda d, c: (d, c, 0, 0)),
            pl.BlockSpec((None, Hp, 3 * Hp), lambda d, c: (d, 0, 0)),
            pl.BlockSpec((None, B, Hp), lambda d, c: (d, 0, 0)),
        ],
        out_specs=pl.BlockSpec((B, Hp), lambda d, c: (0, d)),
        scratch_shapes=[pltpu.VMEM((B, Hp), jnp.float32)],
        compiler_params=pltpu.CompilerParams(
            dimension_semantics=("parallel", "arbitrary")),
    )(gi, whh, bhn_b)

    # Un-pad and concat exactly like PyTorch's
    # last_hidden.transpose(0,1).view(batch, -1).
    return jnp.concatenate([out[:, :H], out[:, Hp:Hp + H]], axis=-1)


# ---------------------------------------------------------------------------
# Parameters & pure-JAX reference (PyTorch GRU semantics, gate order [r,z,n])
# ---------------------------------------------------------------------------
def init_params(key, word_dim, hidden_size):
    H, D = hidden_size, word_dim
    k = 1.0 / jnp.sqrt(jnp.float32(H))
    keys = jax.random.split(key, 8)

    def u(kk, shape):
        return jax.random.uniform(kk, shape, jnp.float32, -k, k)

    return {
        "w_ih_f": u(keys[0], (3 * H, D)), "w_hh_f": u(keys[1], (3 * H, H)),
        "b_ih_f": u(keys[2], (3 * H,)),   "b_hh_f": u(keys[3], (3 * H,)),
        "w_ih_b": u(keys[4], (3 * H, D)), "w_hh_b": u(keys[5], (3 * H, H)),
        "b_ih_b": u(keys[6], (3 * H,)),   "b_hh_b": u(keys[7], (3 * H,)),
    }


def birnn_reference(x, params):
    B, T, D = x.shape
    H = params["w_hh_f"].shape[1]

    def run(xs, w_ih, w_hh, b_ih, b_hh):
        def cell(h, x_t):
            gi = x_t @ w_ih.T + b_ih
            gh = h @ w_hh.T + b_hh
            r = jax.nn.sigmoid(gi[:, :H] + gh[:, :H])
            z = jax.nn.sigmoid(gi[:, H:2 * H] + gh[:, H:2 * H])
            n = jnp.tanh(gi[:, 2 * H:] + r * gh[:, 2 * H:])
            return (1.0 - z) * n + z * h, None
        h0 = jnp.zeros((B, H), jnp.float32)
        h_last, _ = jax.lax.scan(cell, h0, xs)
        return h_last

    xs = jnp.transpose(x, (1, 0, 2))                 # (T, B, D)
    h_f = run(xs, params["w_ih_f"], params["w_hh_f"],
              params["b_ih_f"], params["b_hh_f"])
    h_b = run(xs[::-1], params["w_ih_b"], params["w_hh_b"],
              params["b_ih_b"], params["b_hh_b"])
    return jnp.concatenate([h_f, h_b], axis=-1)


if __name__ == "__main__":
    # Shapes from the original module: batch=10, seq_len=20, word_dim=50, H=100.
    batch, seq_len, word_dim, hidden_size = 10, 20, 50, 100

    key = jax.random.PRNGKey(0)
    kx, kp = jax.random.split(key)
    x = jax.random.normal(kx, (batch, seq_len, word_dim), jnp.float32)
    params = init_params(kp, word_dim, hidden_size)

    out = jax.block_until_ready(birnn_forward(x, params))
    assert out.shape == (batch, 2 * hidden_size), out.shape

    ref = jax.block_until_ready(birnn_reference(x, params))
    # bf16 MXU operands in both the kernel recurrence and the (default
    # precision) reference -> allow a slightly looser tolerance than pure f32.
    assert jnp.allclose(out, ref, rtol=2e-3, atol=2e-3), (
        float(jnp.max(jnp.abs(out - ref))))

    print("KERNEL_OK")
</pallas_src>

<mosaic_0001>
module attributes {stable_mosaic.version = 11 : i64} {
  func.func @birnn_kernel(%arg0: i32, %arg1: i32, %arg2: memref<1x10x10x384xf32, #tpu.memory_space<vmem>>, %arg3: memref<1x128x384xbf16, #tpu.memory_space<vmem>>, %arg4: memref<1x10x128xf32, #tpu.memory_space<vmem>>, %arg5: memref<10x128xf32, #tpu.memory_space<vmem>>, %arg6: memref<10x128xf32, #tpu.memory_space<vmem>>) attributes {dimension_semantics = [#tpu.dimension_semantics<parallel>, #tpu.dimension_semantics<arbitrary>], iteration_bounds = array<i64: 2, 2>, scalar_prefetch = 0 : i64, scratch_operands = 1 : i64, tpu.core_type = #tpu.core_type<tc>, window_params = [{transform_indices = @transform_0, window_bounds = array<i64: 1, 10, 10, 384>}, {transform_indices = @transform_1, window_bounds = array<i64: 1, 128, 384>}, {transform_indices = @transform_2, window_bounds = array<i64: 1, 10, 128>}, {transform_indices = @transform_3, window_bounds = array<i64: 10, 128>}]} {
    %c0_i32 = arith.constant 0 : i32
    %0 = arith.cmpi eq, %arg1, %c0_i32 : i32
    %1 = arith.extui %0 : i1 to i32
    %c0_i32_0 = arith.constant 0 : i32
    %2 = arith.cmpi ne, %1, %c0_i32_0 : i32
    scf.if %2 {
      %cst_62 = arith.constant 0.000000e+00 : f32
      %252 = vector.broadcast %cst_62 : f32 to vector<10x128xf32>
      %c0_63 = arith.constant 0 : index
      %c0_64 = arith.constant 0 : index
      %253 = vector.load %arg6[%c0_63, %c0_64] : memref<10x128xf32, #tpu.memory_space<vmem>>, vector<10x128xf32>
      tpu.vector_store %arg6[%c0_63, %c0_64], %252 {strides = array<i32>} : memref<10x128xf32, #tpu.memory_space<vmem>>, vector<10x128xf32>,
    } else {
    }
    %c0 = arith.constant 0 : index
    %c0_1 = arith.constant 0 : index
    %c0_2 = arith.constant 0 : index
    %3 = vector.load %arg3[%c0, %c0_1, %c0_2] : memref<1x128x384xbf16, #tpu.memory_space<vmem>>, vector<1x128x384xbf16>
    %4 = vector.shape_cast %3 : vector<1x128x384xbf16> to vector<128x384xbf16>
    %c0_3 = arith.constant 0 : index
    %c0_4 = arith.constant 0 : index
    %c0_5 = arith.constant 0 : index
    %5 = vector.load %arg4[%c0_3, %c0_4, %c0_5] : memref<1x10x128xf32, #tpu.memory_space<vmem>>, vector<1x10x128xf32>
    %6 = vector.shape_cast %5 : vector<1x10x128xf32> to vector<10x128xf32>
    %c0_6 = arith.constant 0 : index
    %c0_7 = arith.constant 0 : index
    %7 = vector.load %arg6[%c0_6, %c0_7] : memref<10x128xf32, #tpu.memory_space<vmem>>, vector<10x128xf32>
    %c0_i32_8 = arith.constant 0 : i32
    %c0_9 = arith.constant 0 : index
    %8 = arith.index_cast %c0_i32_8 : i32 to index
    %c0_10 = arith.constant 0 : index
    %c0_11 = arith.constant 0 : index
    %9 = vector.load %arg2[%c0_9, %8, %c0_10, %c0_11] : memref<1x10x10x384xf32, #tpu.memory_space<vmem>>, vector<1x1x10x384xf32>
    %10 = vector.shape_cast %9 : vector<1x1x10x384xf32> to vector<10x384xf32>
    %11 = arith.truncf %7 : vector<10x128xf32> to vector<10x128xbf16>
    %cst = arith.constant dense<0.000000e+00> : vector<10x384xf32>
    %12 = tpu.matmul %11, %4, %cst {dimension_numbers = #tpu.dot_dimension_numbers<[1], [0], [0], [1], [0, 0, 1, 1], [], []>} : vector<10x128xbf16>, vector<128x384xbf16>, vector<10x384xf32> -> vector<10x384xf32>
    %13 = vector.extract_strided_slice %10 {offsets = [0, 0], sizes = [10, 256], strides = [1, 1]} : vector<10x384xf32> to vector<10x256xf32>
    %14 = vector.extract_strided_slice %12 {offsets = [0, 0], sizes = [10, 256], strides = [1, 1]} : vector<10x384xf32> to vector<10x256xf32>
    %15 = arith.addf %13, %14 : vector<10x256xf32>
    %16 = arith.negf %15 : vector<10x256xf32>
    %17 = math.exp %16 : vector<10x256xf32>
    %cst_12 = arith.constant 1.000000e+00 : f32
    %18 = vector.broadcast %cst_12 : f32 to vector<10x256xf32>
    %19 = arith.addf %18, %17 : vector<10x256xf32>
    %20 = arith.divf %18, %19 : vector<10x256xf32>
    %21 = vector.extract_strided_slice %20 {offsets = [0, 0], sizes = [10, 128], strides = [1, 1]} : vector<10x256xf32> to vector<10x128xf32>
    %22 = vector.extract_strided_slice %20 {offsets = [0, 128], sizes = [10, 128], strides = [1, 1]} : vector<10x256xf32> to vector<10x128xf32>
    %23 = vector.extract_strided_slice %10 {offsets = [0, 256], sizes = [10, 128], strides = [1, 1]} : vector<10x384xf32> to vector<10x128xf32>
    %24 = vector.extract_strided_slice %12 {offsets = [0, 256], sizes = [10, 128], strides = [1, 1]} : vector<10x384xf32> to vector<10x128xf32>
    %25 = arith.addf %24, %6 : vector<10x128xf32>
    %26 = arith.mulf %21, %25 : vector<10x128xf32>
    %27 = arith.addf %23, %26 : vector<10x128xf32>
    %28 = math.tanh %27 : vector<10x128xf32>
    %29 = arith.subf %7, %28 : vector<10x128xf32>
    %30 = arith.mulf %22, %29 : vector<10x128xf32>
    %31 = arith.addf %28, %30 : vector<10x128xf32>
    %c1_i32 = arith.constant 1 : i32
    %c0_13 = arith.constant 0 : index
    %32 = arith.index_cast %c1_i32 : i32 to index
    %c0_14 = arith.constant 0 : index
    %c0_15 = arith.constant 0 : index
    %33 = vector.load %arg2[%c0_13, %32, %c0_14, %c0_15] : memref<1x10x10x384xf32, #tpu.memory_space<vmem>>, vector<1x1x10x384xf32>
    %34 = vector.shape_cast %33 : vector<1x1x10x384xf32> to vector<10x384xf32>
    %35 = arith.truncf %31 : vector<10x128xf32> to vector<10x128xbf16>
    %cst_16 = arith.constant dense<0.000000e+00> : vector<10x384xf32>
    %36 = tpu.matmul %35, %4, %cst_16 {dimension_numbers = #tpu.dot_dimension_numbers<[1], [0], [0], [1], [0, 0, 1, 1], [], []>} : vector<10x128xbf16>, vector<128x384xbf16>, vector<10x384xf32> -> vector<10x384xf32>
    %37 = vector.extract_strided_slice %34 {offsets = [0, 0], sizes = [10, 256], strides = [1, 1]} : vector<10x384xf32> to vector<10x256xf32>
    %38 = vector.extract_strided_slice %36 {offsets = [0, 0], sizes = [10, 256], strides = [1, 1]} : vector<10x384xf32> to vector<10x256xf32>
    %39 = arith.addf %37, %38 : vector<10x256xf32>
    %40 = arith.negf %39 : vector<10x256xf32>
    %41 = math.exp %40 : vector<10x256xf32>
    %cst_17 = arith.constant 1.000000e+00 : f32
    %42 = vector.broadcast %cst_17 : f32 to vector<10x256xf32>
    %43 = arith.addf %42, %41 : vector<10x256xf32>
    %44 = arith.divf %42, %43 : vector<10x256xf32>
    %45 = vector.extract_strided_slice %44 {offsets = [0, 0], sizes = [10, 128], strides = [1, 1]} : vector<10x256xf32> to vector<10x128xf32>
    %46 = vector.extract_strided_slice %44 {offsets = [0, 128], sizes = [10, 128], strides = [1, 1]} : vector<10x256xf32> to vector<10x128xf32>
    %47 = vector.extract_strided_slice %34 {offsets = [0, 256], sizes = [10, 128], strides = [1, 1]} : vector<10x384xf32> to vector<10x128xf32>
    %48 = vector.extract_strided_slice %36 {offsets = [0, 256], sizes = [10, 128], strides = [1, 1]} : vector<10x384xf32> to vector<10x128xf32>
    %49 = arith.addf %48, %6 : vector<10x128xf32>
    %50 = arith.mulf %45, %49 : vector<10x128xf32>
    %51 = arith.addf %47, %50 : vector<10x128xf32>
    %52 = math.tanh %51 : vector<10x128xf32>
    %53 = arith.subf %31, %52 : vector<10x128xf32>
    %54 = arith.mulf %46, %53 : vector<10x128xf32>
    %55 = arith.addf %52, %54 : vector<10x128xf32>
    %c2_i32 = arith.constant 2 : i32
    %c0_18 = arith.constant 0 : index
    %56 = arith.index_cast %c2_i32 : i32 to index
    %c0_19 = arith.constant 0 : index
    %c0_20 = arith.constant 0 : index
    %57 = vector.load %arg2[%c0_18, %56, %c0_19, %c0_20] : memref<1x10x10x384xf32, #tpu.memory_space<vmem>>, vector<1x1x10x384xf32>
    %58 = vector.shape_cast %57 : vector<1x1x10x384xf32> to vector<10x384xf32>
    %59 = arith.truncf %55 : vector<10x128xf32> to vector<10x128xbf16>
    %cst_21 = arith.constant dense<0.000000e+00> : vector<10x384xf32>
    %60 = tpu.matmul %59, %4, %cst_21 {dimension_numbers = #tpu.dot_dimension_numbers<[1], [0], [0], [1], [0, 0, 1, 1], [], []>} : vector<10x128xbf16>, vector<128x384xbf16>, vector<10x384xf32> -> vector<10x384xf32>
    %61 = vector.extract_strided_slice %58 {offsets = [0, 0], sizes = [10, 256], strides = [1, 1]} : vector<10x384xf32> to vector<10x256xf32>
    %62 = vector.extract_strided_slice %60 {offsets = [0, 0], sizes = [10, 256], strides = [1, 1]} : vector<10x384xf32> to vector<10x256xf32>
    %63 = arith.addf %61, %62 : vector<10x256xf32>
    %64 = arith.negf %63 : vector<10x256xf32>
    %65 = math.exp %64 : vector<10x256xf32>
    %cst_22 = arith.constant 1.000000e+00 : f32
    %66 = vector.broadcast %cst_22 : f32 to vector<10x256xf32>
    %67 = arith.addf %66, %65 : vector<10x256xf32>
    %68 = arith.divf %66, %67 : vector<10x256xf32>
    %69 = vector.extract_strided_slice %68 {offsets = [0, 0], sizes = [10, 128], strides = [1, 1]} : vector<10x256xf32> to vector<10x128xf32>
    %70 = vector.extract_strided_slice %68 {offsets = [0, 128], sizes = [10, 128], strides = [1, 1]} : vector<10x256xf32> to vector<10x128xf32>
    %71 = vector.extract_strided_slice %58 {offsets = [0, 256], sizes = [10, 128], strides = [1, 1]} : vector<10x384xf32> to vector<10x128xf32>
    %72 = vector.extract_strided_slice %60 {offsets = [0, 256], sizes = [10, 128], strides = [1, 1]} : vector<10x384xf32> to vector<10x128xf32>
    %73 = arith.addf %72, %6 : vector<10x128xf32>
    %74 = arith.mulf %69, %73 : vector<10x128xf32>
    %75 = arith.addf %71, %74 : vector<10x128xf32>
    %76 = math.tanh %75 : vector<10x128xf32>
    %77 = arith.subf %55, %76 : vector<10x128xf32>
    %78 = arith.mulf %70, %77 : vector<10x128xf32>
    %79 = arith.addf %76, %78 : vector<10x128xf32>
    %c3_i32 = arith.constant 3 : i32
    %c0_23 = arith.constant 0 : index
    %80 = arith.index_cast %c3_i32 : i32 to index
    %c0_24 = arith.constant 0 : index
    %c0_25 = arith.constant 0 : index
    %81 = vector.load %arg2[%c0_23, %80, %c0_24, %c0_25] : memref<1x10x10x384xf32, #tpu.memory_space<vmem>>, vector<1x1x10x384xf32>
    %82 = vector.shape_cast %81 : vector<1x1x10x384xf32> to vector<10x384xf32>
    %83 = arith.truncf %79 : vector<10x128xf32> to vector<10x128xbf16>
    %cst_26 = arith.constant dense<0.000000e+00> : vector<10x384xf32>
    %84 = tpu.matmul %83, %4, %cst_26 {dimension_numbers = #tpu.dot_dimension_numbers<[1], [0], [0], [1], [0, 0, 1, 1], [], []>} : vector<10x128xbf16>, vector<128x384xbf16>, vector<10x384xf32> -> vector<10x384xf32>
    %85 = vector.extract_strided_slice %82 {offsets = [0, 0], sizes = [10, 256], strides = [1, 1]} : vector<10x384xf32> to vector<10x256xf32>
    %86 = vector.extract_strided_slice %84 {offsets = [0, 0], sizes = [10, 256], strides = [1, 1]} : vector<10x384xf32> to vector<10x256xf32>
    %87 = arith.addf %85, %86 : vector<10x256xf32>
    %88 = arith.negf %87 : vector<10x256xf32>
    %89 = math.exp %88 : vector<10x256xf32>
    %cst_27 = arith.constant 1.000000e+00 : f32
    %90 = vector.broadcast %cst_27 : f32 to vector<10x256xf32>
    %91 = arith.addf %90, %89 : vector<10x256xf32>
    %92 = arith.divf %90, %91 : vector<10x256xf32>
    %93 = vector.extract_strided_slice %92 {offsets = [0, 0], sizes = [10, 128], strides = [1, 1]} : vector<10x256xf32> to vector<10x128xf32>
    %94 = vector.extract_strided_slice %92 {offsets = [0, 128], sizes = [10, 128], strides = [1, 1]} : vector<10x256xf32> to vector<10x128xf32>
    %95 = vector.extract_strided_slice %82 {offsets = [0, 256], sizes = [10, 128], strides = [1, 1]} : vector<10x384xf32> to vector<10x128xf32>
    %96 = vector.extract_strided_slice %84 {offsets = [0, 256], sizes = [10, 128], strides = [1, 1]} : vector<10x384xf32> to vector<10x128xf32>
    %97 = arith.addf %96, %6 : vector<10x128xf32>
    %98 = arith.mulf %93, %97 : vector<10x128xf32>
    %99 = arith.addf %95, %98 : vector<10x128xf32>
    %100 = math.tanh %99 : vector<10x128xf32>
    %101 = arith.subf %79, %100 : vector<10x128xf32>
    %102 = arith.mulf %94, %101 : vector<10x128xf32>
    %103 = arith.addf %100, %102 : vector<10x128xf32>
    %c4_i32 = arith.constant 4 : i32
    %c0_28 = arith.constant 0 : index
    %104 = arith.index_cast %c4_i32 : i32 to index
    %c0_29 = arith.constant 0 : index
    %c0_30 = arith.constant 0 : index
    %105 = vector.load %arg2[%c0_28, %104, %c0_29, %c0_30] : memref<1x10x10x384xf32, #tpu.memory_space<vmem>>, vector<1x1x10x384xf32>
    %106 = vector.shape_cast %105 : vector<1x1x10x384xf32> to vector<10x384xf32>
    %107 = arith.truncf %103 : vector<10x128xf32> to vector<10x128xbf16>
    %cst_31 = arith.constant dense<0.000000e+00> : vector<10x384xf32>
    %108 = tpu.matmul %107, %4, %cst_31 {dimension_numbers = #tpu.dot_dimension_numbers<[1], [0], [0], [1], [0, 0, 1, 1], [], []>} : vector<10x128xbf16>, vector<128x384xbf16>, vector<10x384xf32> -> vector<10x384xf32>
    %109 = vector.extract_strided_slice %106 {offsets = [0, 0], sizes = [10, 256], strides = [1, 1]} : vector<10x384xf32> to vector<10x256xf32>
    %110 = vector.extract_strided_slice %108 {offsets = [0, 0], sizes = [10, 256], strides = [1, 1]} : vector<10x384xf32> to vector<10x256xf32>
    %111 = arith.addf %109, %110 : vector<10x256xf32>
    %112 = arith.negf %111 : vector<10x256xf32>
    %113 = math.exp %112 : vector<10x256xf32>
    %cst_32 = arith.constant 1.000000e+00 : f32
    %114 = vector.broadcast %cst_32 : f32 to vector<10x256xf32>
    %115 = arith.addf %114, %113 : vector<10x256xf32>
    %116 = arith.divf %114, %115 : vector<10x256xf32>
    %117 = vector.extract_strided_slice %116 {offsets = [0, 0], sizes = [10, 128], strides = [1, 1]} : vector<10x256xf32> to vector<10x128xf32>
    %118 = vector.extract_strided_slice %116 {offsets = [0, 128], sizes = [10, 128], strides = [1, 1]} : vector<10x256xf32> to vector<10x128xf32>
    %119 = vector.extract_strided_slice %106 {offsets = [0, 256], sizes = [10, 128], strides = [1, 1]} : vector<10x384xf32> to vector<10x128xf32>
    %120 = vector.extract_strided_slice %108 {offsets = [0, 256], sizes = [10, 128], strides = [1, 1]} : vector<10x384xf32> to vector<10x128xf32>
    %121 = arith.addf %120, %6 : vector<10x128xf32>
    %122 = arith.mulf %117, %121 : vector<10x128xf32>
    %123 = arith.addf %119, %122 : vector<10x128xf32>
    %124 = math.tanh %123 : vector<10x128xf32>
    %125 = arith.subf %103, %124 : vector<10x128xf32>
    %126 = arith.mulf %118, %125 : vector<10x128xf32>
    %127 = arith.addf %124, %126 : vector<10x128xf32>
    %c5_i32 = arith.constant 5 : i32
    %c0_33 = arith.constant 0 : index
    %128 = arith.index_cast %c5_i32 : i32 to index
    %c0_34 = arith.constant 0 : index
    %c0_35 = arith.constant 0 : index
    %129 = vector.load %arg2[%c0_33, %128, %c0_34, %c0_35] : memref<1x10x10x384xf32, #tpu.memory_space<vmem>>, vector<1x1x10x384xf32>
    %130 = vector.shape_cast %129 : vector<1x1x10x384xf32> to vector<10x384xf32>
    %131 = arith.truncf %127 : vector<10x128xf32> to vector<10x128xbf16>
    %cst_36 = arith.constant dense<0.000000e+00> : vector<10x384xf32>
    %132 = tpu.matmul %131, %4, %cst_36 {dimension_numbers = #tpu.dot_dimension_numbers<[1], [0], [0], [1], [0, 0, 1, 1], [], []>} : vector<10x128xbf16>, vector<128x384xbf16>, vector<10x384xf32> -> vector<10x384xf32>
    %133 = vector.extract_strided_slice %130 {offsets = [0, 0], sizes = [10, 256], strides = [1, 1]} : vector<10x384xf32> to vector<10x256xf32>
    %134 = vector.extract_strided_slice %132 {offsets = [0, 0], sizes = [10, 256], strides = [1, 1]} : vector<10x384xf32> to vector<10x256xf32>
    %135 = arith.addf %133, %134 : vector<10x256xf32>
    %136 = arith.negf %135 : vector<10x256xf32>
    %137 = math.exp %136 : vector<10x256xf32>
    %cst_37 = arith.constant 1.000000e+00 : f32
    %138 = vector.broadcast %cst_37 : f32 to vector<10x256xf32>
    %139 = arith.addf %138, %137 : vector<10x256xf32>
    %140 = arith.divf %138, %139 : vector<10x256xf32>
    %141 = vector.extract_strided_slice %140 {offsets = [0, 0], sizes = [10, 128], strides = [1, 1]} : vector<10x256xf32> to vector<10x128xf32>
    %142 = vector.extract_strided_slice %140 {offsets = [0, 128], sizes = [10, 128], strides = [1, 1]} : vector<10x256xf32> to vector<10x128xf32>
    %143 = vector.extract_strided_slice %130 {offsets = [0, 256], sizes = [10, 128], strides = [1, 1]} : vector<10x384xf32> to vector<10x128xf32>
    %144 = vector.extract_strided_slice %132 {offsets = [0, 256], sizes = [10, 128], strides = [1, 1]} : vector<10x384xf32> to vector<10x128xf32>
    %145 = arith.addf %144, %6 : vector<10x128xf32>
    %146 = arith.mulf %141, %145 : vector<10x128xf32>
    %147 = arith.addf %143, %146 : vector<10x128xf32>
    %148 = math.tanh %147 : vector<10x128xf32>
    %149 = arith.subf %127, %148 : vector<10x128xf32>
    %150 = arith.mulf %142, %149 : vector<10x128xf32>
    %151 = arith.addf %148, %150 : vector<10x128xf32>
    %c6_i32 = arith.constant 6 : i32
    %c0_38 = arith.constant 0 : index
    %152 = arith.index_cast %c6_i32 : i32 to index
    %c0_39 = arith.constant 0 : index
    %c0_40 = arith.constant 0 : index
    %153 = vector.load %arg2[%c0_38, %152, %c0_39, %c0_40] : memref<1x10x10x384xf32, #tpu.memory_space<vmem>>, vector<1x1x10x384xf32>
    %154 = vector.shape_cast %153 : vector<1x1x10x384xf32> to vector<10x384xf32>
    %155 = arith.truncf %151 : vector<10x128xf32> to vector<10x128xbf16>
    %cst_41 = arith.constant dense<0.000000e+00> : vector<10x384xf32>
    %156 = tpu.matmul %155, %4, %cst_41 {dimension_numbers = #tpu.dot_dimension_numbers<[1], [0], [0], [1], [0, 0, 1, 1], [], []>} : vector<10x128xbf16>, vector<128x384xbf16>, vector<10x384xf32> -> vector<10x384xf32>
    %157 = vector.extract_strided_slice %154 {offsets = [0, 0], sizes = [10, 256], strides = [1, 1]} : vector<10x384xf32> to vector<10x256xf32>
    %158 = vector.extract_strided_slice %156 {offsets = [0, 0], sizes = [10, 256], strides = [1, 1]} : vector<10x384xf32> to vector<10x256xf32>
    %159 = arith.addf %157, %158 : vector<10x256xf32>
    %160 = arith.negf %159 : vector<10x256xf32>
    %161 = math.exp %160 : vector<10x256xf32>
    %cst_42 = arith.constant 1.000000e+00 : f32
    %162 = vector.broadcast %cst_42 : f32 to vector<10x256xf32>
    %163 = arith.addf %162, %161 : vector<10x256xf32>
    %164 = arith.divf %162, %163 : vector<10x256xf32>
    %165 = vector.extract_strided_slice %164 {offsets = [0, 0], sizes = [10, 128], strides = [1, 1]} : vector<10x256xf32> to vector<10x128xf32>
    %166 = vector.extract_strided_slice %164 {offsets = [0, 128], sizes = [10, 128], strides = [1, 1]} : vector<10x256xf32> to vector<10x128xf32>
    %167 = vector.extract_strided_slice %154 {offsets = [0, 256], sizes = [10, 128], strides = [1, 1]} : vector<10x384xf32> to vector<10x128xf32>
    %168 = vector.extract_strided_slice %156 {offsets = [0, 256], sizes = [10, 128], strides = [1, 1]} : vector<10x384xf32> to vector<10x128xf32>
    %169 = arith.addf %168, %6 : vector<10x128xf32>
    %170 = arith.mulf %165, %169 : vector<10x128xf32>
    %171 = arith.addf %167, %170 : vector<10x128xf32>
    %172 = math.tanh %171 : vector<10x128xf32>
    %173 = arith.subf %151, %172 : vector<10x128xf32>
    %174 = arith.mulf %166, %173 : vector<10x128xf32>
    %175 = arith.addf %172, %174 : vector<10x128xf32>
    %c7_i32 = arith.constant 7 : i32
    %c0_43 = arith.constant 0 : index
    %176 = arith.index_cast %c7_i32 : i32 to index
    %c0_44 = arith.constant 0 : index
    %c0_45 = arith.constant 0 : index
    %177 = vector.load %arg2[%c0_43, %176, %c0_44, %c0_45] : memref<1x10x10x384xf32, #tpu.memory_space<vmem>>, vector<1x1x10x384xf32>
    %178 = vector.shape_cast %177 : vector<1x1x10x384xf32> to vector<10x384xf32>
    %179 = arith.truncf %175 : vector<10x128xf32> to vector<10x128xbf16>
    %cst_46 = arith.constant dense<0.000000e+00> : vector<10x384xf32>
    %180 = tpu.matmul %179, %4, %cst_46 {dimension_numbers = #tpu.dot_dimension_numbers<[1], [0], [0], [1], [0, 0, 1, 1], [], []>} : vector<10x128xbf16>, vector<128x384xbf16>, vector<10x384xf32> -> vector<10x384xf32>
    %181 = vector.extract_strided_slice %178 {offsets = [0, 0], sizes = [10, 256], strides = [1, 1]} : vector<10x384xf32> to vector<10x256xf32>
    %182 = vector.extract_strided_slice %180 {offsets = [0, 0], sizes = [10, 256], strides = [1, 1]} : vector<10x384xf32> to vector<10x256xf32>
    %183 = arith.addf %181, %182 : vector<10x256xf32>
    %184 = arith.negf %183 : vector<10x256xf32>
    %185 = math.exp %184 : vector<10x256xf32>
    %cst_47 = arith.constant 1.000000e+00 : f32
    %186 = vector.broadcast %cst_47 : f32 to vector<10x256xf32>
    %187 = arith.addf %186, %185 : vector<10x256xf32>
    %188 = arith.divf %186, %187 : vector<10x256xf32>
    %189 = vector.extract_strided_slice %188 {offsets = [0, 0], sizes = [10, 128], strides = [1, 1]} : vector<10x256xf32> to vector<10x128xf32>
    %190 = vector.extract_strided_slice %188 {offsets = [0, 128], sizes = [10, 128], strides = [1, 1]} : vector<10x256xf32> to vector<10x128xf32>
    %191 = vector.extract_strided_slice %178 {offsets = [0, 256], sizes = [10, 128], strides = [1, 1]} : vector<10x384xf32> to vector<10x128xf32>
    %192 = vector.extract_strided_slice %180 {offsets = [0, 256], sizes = [10, 128], strides = [1, 1]} : vector<10x384xf32> to vector<10x128xf32>
    %193 = arith.addf %192, %6 : vector<10x128xf32>
    %194 = arith.mulf %189, %193 : vector<10x128xf32>
    %195 = arith.addf %191, %194 : vector<10x128xf32>
    %196 = math.tanh %195 : vector<10x128xf32>
    %197 = arith.subf %175, %196 : vector<10x128xf32>
    %198 = arith.mulf %190, %197 : vector<10x128xf32>
    %199 = arith.addf %196, %198 : vector<10x128xf32>
    %c8_i32 = arith.constant 8 : i32
    %c0_48 = arith.constant 0 : index
    %200 = arith.index_cast %c8_i32 : i32 to index
    %c0_49 = arith.constant 0 : index
    %c0_50 = arith.constant 0 : index
    %201 = vector.load %arg2[%c0_48, %200, %c0_49, %c0_50] : memref<1x10x10x384xf32, #tpu.memory_space<vmem>>, vector<1x1x10x384xf32>
    %202 = vector.shape_cast %201 : vector<1x1x10x384xf32> to vector<10x384xf32>
    %203 = arith.truncf %199 : vector<10x128xf32> to vector<10x128xbf16>
    %cst_51 = arith.constant dense<0.000000e+00> : vector<10x384xf32>
    %204 = tpu.matmul %203, %4, %cst_51 {dimension_numbers = #tpu.dot_dimension_numbers<[1], [0], [0], [1], [0, 0, 1, 1], [], []>} : vector<10x128xbf16>, vector<128x384xbf16>, vector<10x384xf32> -> vector<10x384xf32>
    %205 = vector.extract_strided_slice %202 {offsets = [0, 0], sizes = [10, 256], strides = [1, 1]} : vector<10x384xf32> to vector<10x256xf32>
    %206 = vector.extract_strided_slice %204 {offsets = [0, 0], sizes = [10, 256], strides = [1, 1]} : vector<10x384xf32> to vector<10x256xf32>
    %207 = arith.addf %205, %206 : vector<10x256xf32>
    %208 = arith.negf %207 : vector<10x256xf32>
    %209 = math.exp %208 : vector<10x256xf32>
    %cst_52 = arith.constant 1.000000e+00 : f32
    %210 = vector.broadcast %cst_52 : f32 to vector<10x256xf32>
    %211 = arith.addf %210, %209 : vector<10x256xf32>
    %212 = arith.divf %210, %211 : vector<10x256xf32>
    %213 = vector.extract_strided_slice %212 {offsets = [0, 0], sizes = [10, 128], strides = [1, 1]} : vector<10x256xf32> to vector<10x128xf32>
    %214 = vector.extract_strided_slice %212 {offsets = [0, 128], sizes = [10, 128], strides = [1, 1]} : vector<10x256xf32> to vector<10x128xf32>
    %215 = vector.extract_strided_slice %202 {offsets = [0, 256], sizes = [10, 128], strides = [1, 1]} : vector<10x384xf32> to vector<10x128xf32>
    %216 = vector.extract_strided_slice %204 {offsets = [0, 256], sizes = [10, 128], strides = [1, 1]} : vector<10x384xf32> to vector<10x128xf32>
    %217 = arith.addf %216, %6 : vector<10x128xf32>
    %218 = arith.mulf %213, %217 : vector<10x128xf32>
    %219 = arith.addf %215, %218 : vector<10x128xf32>
    %220 = math.tanh %219 : vector<10x128xf32>
    %221 = arith.subf %199, %220 : vector<10x128xf32>
    %222 = arith.mulf %214, %221 : vector<10x128xf32>
    %223 = arith.addf %220, %222 : vector<10x128xf32>
    %c9_i32 = arith.constant 9 : i32
    %c0_53 = arith.constant 0 : index
    %224 = arith.index_cast %c9_i32 : i32 to index
    %c0_54 = arith.constant 0 : index
    %c0_55 = arith.constant 0 : index
    %225 = vector.load %arg2[%c0_53, %224, %c0_54, %c0_55] : memref<1x10x10x384xf32, #tpu.memory_space<vmem>>, vector<1x1x10x384xf32>
    %226 = vector.shape_cast %225 : vector<1x1x10x384xf32> to vector<10x384xf32>
    %227 = arith.truncf %223 : vector<10x128xf32> to vector<10x128xbf16>
    %cst_56 = arith.constant dense<0.000000e+00> : vector<10x384xf32>
    %228 = tpu.matmul %227, %4, %cst_56 {dimension_numbers = #tpu.dot_dimension_numbers<[1], [0], [0], [1], [0, 0, 1, 1], [], []>} : vector<10x128xbf16>, vector<128x384xbf16>, vector<10x384xf32> -> vector<10x384xf32>
    %229 = vector.extract_strided_slice %226 {offsets = [0, 0], sizes = [10, 256], strides = [1, 1]} : vector<10x384xf32> to vector<10x256xf32>
    %230 = vector.extract_strided_slice %228 {offsets = [0, 0], sizes = [10, 256], strides = [1, 1]} : vector<10x384xf32> to vector<10x256xf32>
    %231 = arith.addf %229, %230 : vector<10x256xf32>
    %232 = arith.negf %231 : vector<10x256xf32>
    %233 = math.exp %232 : vector<10x256xf32>
    %cst_57 = arith.constant 1.000000e+00 : f32
    %234 = vector.broadcast %cst_57 : f32 to vector<10x256xf32>
    %235 = arith.addf %234, %233 : vector<10x256xf32>
    %236 = arith.divf %234, %235 : vector<10x256xf32>
    %237 = vector.extract_strided_slice %236 {offsets = [0, 0], sizes = [10, 128], strides = [1, 1]} : vector<10x256xf32> to vector<10x128xf32>
    %238 = vector.extract_strided_slice %236 {offsets = [0, 128], sizes = [10, 128], strides = [1, 1]} : vector<10x256xf32> to vector<10x128xf32>
    %239 = vector.extract_strided_slice %226 {offsets = [0, 256], sizes = [10, 128], strides = [1, 1]} : vector<10x384xf32> to vector<10x128xf32>
    %240 = vector.extract_strided_slice %228 {offsets = [0, 256], sizes = [10, 128], strides = [1, 1]} : vector<10x384xf32> to vector<10x128xf32>
    %241 = arith.addf %240, %6 : vector<10x128xf32>
    %242 = arith.mulf %237, %241 : vector<10x128xf32>
    %243 = arith.addf %239, %242 : vector<10x128xf32>
    %244 = math.tanh %243 : vector<10x128xf32>
    %245 = arith.subf %223, %244 : vector<10x128xf32>
    %246 = arith.mulf %238, %245 : vector<10x128xf32>
    %247 = arith.addf %244, %246 : vector<10x128xf32>
    %c10_i32 = arith.constant 10 : i32
    %c0_58 = arith.constant 0 : index
    %c0_59 = arith.constant 0 : index
    %248 = vector.load %arg6[%c0_58, %c0_59] : memref<10x128xf32, #tpu.memory_space<vmem>>, vector<10x128xf32>
    tpu.vector_store %arg6[%c0_58, %c0_59], %247 {strides = array<i32>} : memref<10x128xf32, #tpu.memory_space<vmem>>, vector<10x128xf32>,
    %c1_i32_60 = arith.constant 1 : i32
    %249 = arith.cmpi eq, %arg1, %c1_i32_60 : i32
    %250 = arith.extui %249 : i1 to i32
    %c0_i32_61 = arith.constant 0 : i32
    %251 = arith.cmpi ne, %250, %c0_i32_61 : i32
    scf.if %251 {
      %c0_62 = arith.constant 0 : index
      %c0_63 = arith.constant 0 : index
      %252 = vector.load %arg5[%c0_62, %c0_63] : memref<10x128xf32, #tpu.memory_space<vmem>>, vector<10x128xf32>
      tpu.vector_store %arg5[%c0_62, %c0_63], %247 {strides = array<i32>} : memref<10x128xf32, #tpu.memory_space<vmem>>, vector<10x128xf32>,
    } else {
    }
    return
  }
  func.func @transform_0(%arg0: i32, %arg1: i32) -> (i32, i32, i32, i32) {
    %c0_i32 = arith.constant 0 : i32
    %c0_i32_0 = arith.constant 0 : i32
    %c0_i32_1 = arith.constant 0 : i32
    return %arg0, %arg1, %c0_i32, %c0_i32_0 : i32, i32, i32, i32
  }
  func.func @transform_1(%arg0: i32, %arg1: i32) -> (i32, i32, i32) {
    %c0_i32 = arith.constant 0 : i32
    %c0_i32_0 = arith.constant 0 : i32
    %c0_i32_1 = arith.constant 0 : i32
    return %arg0, %c0_i32, %c0_i32_0 : i32, i32, i32
  }
  func.func @transform_2(%arg0: i32, %arg1: i32) -> (i32, i32, i32) {
    %c0_i32 = arith.constant 0 : i32
    %c0_i32_0 = arith.constant 0 : i32
    %c0_i32_1 = arith.constant 0 : i32
    return %arg0, %c0_i32, %c0_i32_0 : i32, i32, i32
  }
  func.func @transform_3(%arg0: i32, %arg1: i32) -> (i32, i32) {
    %c0_i32 = arith.constant 0 : i32
    %c0_i32_0 = arith.constant 0 : i32
    return %c0_i32, %arg0 : i32, i32
  }
}

</mosaic_0001>

<llo_original>
// kernel: tpu_custom_call.1
$region0: #{tpu_custom_call.1}
  #allocation0 [shape = 'u32[]', space=smem, size = 0x4, offset = 0x4, fixed_abs, tag = 'smem constant byte address 0x4 - core index']
  #allocation1 [shape = 'u32[144,128]{1,0:T(1,128)}', space=vmem, size = 0x12000, scoped, tag = 'internal scratch']
  #allocation2 [shape = 'f32[10,128]{1,0:T(8,128)}', space=vmem, size = 0x2000, scoped, tag = 'scratch operand']
  %s0 = inlined_call_operand.vmem [shape: f32[2,20,10,384], index: 0, kind: input, shape index: {}]
  %s1 = inlined_call_operand.vmem [shape: bf16[2,128,384], index: 1, kind: input, shape index: {}]
  %s2 = inlined_call_operand.vmem [shape: f32[2,10,128], index: 2, kind: input, shape index: {}]
  %s3 = inlined_call_operand.hbm [shape: f32[10,256], index: 3, kind: output, shape index: {}]
  %s4 = sld [smem:[#allocation0]]
  $region53: #{tpu_custom_call.1} parent=0
    _
  %s6 = ssub.s32 1, %s4
  %s7 = scalar_select 0, %s6, %s4
  $region1: #{tpu_custom_call.1} parent=0
    #allocation3 [shape = 'u8[16384]{0}', space=vmem, size = 0x4000, scoped, tag = 'output window, operand 0']
    #allocation4 [shape = 's32[2]{0}', space=sflag, size = 0x8, scoped, tag = 'scoped memory for tpu_custom_call.1']
    %8 = vsyncpa [#allocation4], 0
    %s9 = scalar_lea.sflag [#allocation4], 1
    %10 = vsyncpa %s9, 0
    loop: start=0, step=1, limit=6
    $region2: #{tpu_custom_call.1} parent=1 // loop_pre_header
      _
    $region3: #{tpu_custom_call.1} parent=1 // loop_header
      %s12 = sphi 0, %s16
      %p13 = scmp.ge.s32.totalorder %s12, 6
      %s19 = sphi 0, %s31
      %s20 = sphi 0, %s27
      %s21 = sphi 0, %s19
      %s22 = sphi 0, %s20
      %s23 = sphi 0, %s21
      %s24 = sphi 0, %s22
      %s36 = sphi 0, %s38
      %s39 = sphi 0, %s36
      %s40 = sphi 0, %s39
      %s56 = sphi 0, %s40
      %s62 = sphi 0, %s64
      %s65 = sphi 0, %s62
      %s66 = sphi 0, %s65
      %s82 = sphi 0, %s66
      %s88 = sphi 0, %s90
      %s91 = sphi 0, %s88
      %s92 = sphi 0, %s91
      %s108 = sphi 0, %s92
      %s114 = sphi 0, %s116
      %s117 = sphi 0, %s114
      %s118 = sphi 0, %s117
      %s134 = sphi 0, %s118
    $region4: #{tpu_custom_call.1} parent=1 // loop_header_branch
      %15 = sbr.rel (%p13) target = $region8
    $region5: #{tpu_custom_call.1} parent=1 // loop_body
      %s17 = ssub.s32 %s12, 1
      %s18 = ssub.s32 %s12, 2
      %s25 = sadd.s32 1, %s20
      %p26 = scmp.ge.s32.totalorder %s25, 2
      %s27 = scalar_select %p26, 0, %s25
      %s28 = sadd.s32 1, %s19
      %s29 = scalar_select %p26, %s28, %s19
      %p30 = scmp.ge.s32.totalorder %s29, 2
      %s31 = scalar_select %p30, 0, %s29
      %s32 = ssub.s32 %s19, %s31
      %s33 = ssub.s32 %s20, %s27
      %s34 = sor.u32 %s32, %s33
      %p35 = scmp.eq.s32.totalorder %s34, 0
      %s37 = sadd.s32 %s36, 1
      %s38 = scalar_select %p35, %s36, %s37
      %p41 = pneg %p35
      %p42 = scmp.eq.s32.totalorder %s12, 3
      %p43 = por %p41, %p42
      %p44 = scmp.ne.s32.totalorder %s36, %s39
      %p45 = scmp.eq.s32.totalorder %s12, 0
      %p46 = por %p44, %p45
      %p47 = scmp.ne.s32.totalorder %s36, %s39
      %p48 = scmp.eq.s32.totalorder %s17, 3
      %p49 = por %p47, %p48
      %p50 = scmp.ne.s32.totalorder %s39, %s40
      %p51 = scmp.eq.s32.totalorder %s17, 0
      %p52 = por %p50, %p51
      %p53 = scmp.ne.s32.totalorder %s39, %s40
      %p54 = scmp.eq.s32.totalorder %s18, 3
      %p55 = por %p53, %p54
      %p57 = scmp.ne.s32.totalorder %s40, %s56
      %p58 = scmp.eq.s32.totalorder %s18, 0
      %p59 = por %p57, %p58
      %s60 = ssub.s32 %s19, %s31
      %p61 = scmp.eq.s32.totalorder %s60, 0
      %s63 = sadd.s32 %s62, 1
      %s64 = scalar_select %p61, %s62, %s63
      %p67 = pneg %p61
      %p68 = scmp.eq.s32.totalorder %s12, 3
      %p69 = por %p67, %p68
      %p70 = scmp.ne.s32.totalorder %s62, %s65
      %p71 = scmp.eq.s32.totalorder %s12, 0
      %p72 = por %p70, %p71
      %p73 = scmp.ne.s32.totalorder %s62, %s65
      %p74 = scmp.eq.s32.totalorder %s17, 3
      %p75 = por %p73, %p74
      %p76 = scmp.ne.s32.totalorder %s65, %s66
      %p77 = scmp.eq.s32.totalorder %s17, 0
      %p78 = por %p76, %p77
      %p79 = scmp.ne.s32.totalorder %s65, %s66
      %p80 = scmp.eq.s32.totalorder %s18, 3
      %p81 = por %p79, %p80
      %p83 = scmp.ne.s32.totalorder %s66, %s82
      %p84 = scmp.eq.s32.totalorder %s18, 0
      %p85 = por %p83, %p84
      %s86 = ssub.s32 %s19, %s31
      %p87 = scmp.eq.s32.totalorder %s86, 0
      %s89 = sadd.s32 %s88, 1
      %s90 = scalar_select %p87, %s88, %s89
      %p93 = pneg %p87
      %p94 = scmp.eq.s32.totalorder %s12, 3
      %p95 = por %p93, %p94
      %p96 = scmp.ne.s32.totalorder %s88, %s91
      %p97 = scmp.eq.s32.totalorder %s12, 0
      %p98 = por %p96, %p97
      %p99 = scmp.ne.s32.totalorder %s88, %s91
      %p100 = scmp.eq.s32.totalorder %s17, 3
      %p101 = por %p99, %p100
      %p102 = scmp.ne.s32.totalorder %s91, %s92
      %p103 = scmp.eq.s32.totalorder %s17, 0
      %p104 = por %p102, %p103
      %p105 = scmp.ne.s32.totalorder %s91, %s92
      %p106 = scmp.eq.s32.totalorder %s18, 3
      %p107 = por %p105, %p106
      %p109 = scmp.ne.s32.totalorder %s92, %s108
      %p110 = scmp.eq.s32.totalorder %s18, 0
      %p111 = por %p109, %p110
      %s112 = ssub.s32 %s19, %s31
      %p113 = scmp.eq.s32.totalorder %s112, 0
      %s115 = sadd.s32 %s114, 1
      %s116 = scalar_select %p113, %s114, %s115
      %p119 = pneg %p113
      %p120 = scmp.eq.s32.totalorder %s12, 3
      %p121 = por %p119, %p120
      %p122 = scmp.ne.s32.totalorder %s114, %s117
      %p123 = scmp.eq.s32.totalorder %s12, 0
      %p124 = por %p122, %p123
      %p125 = scmp.ne.s32.totalorder %s114, %s117
      %p126 = scmp.eq.s32.totalorder %s17, 3
      %p127 = por %p125, %p126
      %p128 = scmp.ne.s32.totalorder %s117, %s118
      %p129 = scmp.eq.s32.totalorder %s17, 0
      %p130 = por %p128, %p129
      %p131 = scmp.ne.s32.totalorder %s117, %s118
      %p132 = scmp.eq.s32.totalorder %s18, 3
      %p133 = por %p131, %p132
      %p135 = scmp.ne.s32.totalorder %s118, %s134
      %p136 = scmp.eq.s32.totalorder %s18, 0
      %p137 = por %p135, %p136
      %p138 = scmp.le.s32.totalorder 1, %s12
      %p139 = scmp.lt.s32.totalorder %s12, 5
      %p140 = pnand %p138, %p139
      %p141 = pneg %p140
      // Predicated region
      $region9: #{tpu_custom_call.1} parent=5 // pred_check
        _
      $region10: #{tpu_custom_call.1} parent=5 // pred_check_branch
        %143 = sbr.rel (%p140) target = $region12
      $region11: #{tpu_custom_call.1} parent=5 // pred_region
        %s144 = ssub.s32 %s12, 1
      $region12: #{tpu_custom_call.1} parent=5 // pred_fallthru
        _
      %p145 = scmp.lt.s32.totalorder %s12, 4
      // Predicated region
      $region13: #{tpu_custom_call.1} parent=5 // pred_check
        %p146 = pneg %p145
      $region14: #{tpu_custom_call.1} parent=5 // pred_check_branch
        %148 = sbr.rel (%p146) target = $region16
      $region15: #{tpu_custom_call.1} parent=5 // pred_region
        // Predicated region
        $region17: #{tpu_custom_call.1} parent=15 // pred_check
          %p149 = pneg %p46
        $region18: #{tpu_custom_call.1} parent=15 // pred_check_branch
          %151 = sbr.rel (%p149) target = $region20
        $region19: #{tpu_custom_call.1} parent=15 // pred_region
          %s152 = smul.u32 10, %s20
          %p153 = scmp.lt.s32.totalorder %s19, 1
          %s154 = scalar_select %p153, %s19, 1
          %p155 = scmp.lt.s32.totalorder %s152, 19
          %s156 = scalar_select %p155, %s152, 19
          %s157 = smul.addr %s156, 6
          %s158 = smul.addr %s154, 120
          %s159 = sadd.s32 %s157, %s158
          %s160 = smul.addr %s159, 8
          %s161 = scalar_lea.vmem %s0, %s160
          %s162 = smul.u32 10, %s20
        $region20: #{tpu_custom_call.1} parent=15 // pred_fallthru
          _
        // Predicated region
        $region21: #{tpu_custom_call.1} parent=15 // pred_check
          %p163 = pneg %p72
        $region22: #{tpu_custom_call.1} parent=15 // pred_check_branch
          %165 = sbr.rel (%p163) target = $region24
        $region23: #{tpu_custom_call.1} parent=15 // pred_region
          %p166 = scmp.lt.s32.totalorder %s19, 1
          %s167 = scalar_select %p166, %s19, 1
          %s168 = smul.addr %s167, 48
          %s169 = smul.addr %s168, 4
          %s170 = scalar_lea.vmem %s1, %s169
        $region24: #{tpu_custom_call.1} parent=15 // pred_fallthru
          _
        // Predicated region
        $region25: #{tpu_custom_call.1} parent=15 // pred_check
          %p171 = pneg %p98
        $region26: #{tpu_custom_call.1} parent=15 // pred_check_branch
          %173 = sbr.rel (%p171) target = $region28
        $region27: #{tpu_custom_call.1} parent=15 // pred_region
          %p174 = scmp.lt.s32.totalorder %s19, 1
          %s175 = scalar_select %p174, %s19, 1
          %s176 = smul.addr %s175, 2
          %s177 = smul.addr %s176, 8
          %s178 = scalar_lea.vmem %s2, %s177
        $region28: #{tpu_custom_call.1} parent=15 // pred_fallthru
          _
      $region16: #{tpu_custom_call.1} parent=5 // pred_fallthru
        _
      %p179 = scmp.le.s32.totalorder 1, %s12
      %p180 = scmp.lt.s32.totalorder %s12, 5
      %p181 = pnand %p179, %p180
      %p182 = pneg %p181
      // Predicated region
      $region29: #{tpu_custom_call.1} parent=5 // pred_check
        _
      $region30: #{tpu_custom_call.1} parent=5 // pred_check_branch
        %184 = sbr.rel (%p181) target = $region32
      $region31: #{tpu_custom_call.1} parent=5 // pred_region
        %s185 = ssub.s32 %s12, 1
        %s186 = smul.u32 10, %s22
        %p187 = scmp.lt.s32.totalorder %s21, 1
        %s188 = scalar_select %p187, %s21, 1
        %p189 = scmp.lt.s32.totalorder %s186, 19
        %s190 = scalar_select %p189, %s186, 19
        %s191 = smul.addr %s190, 6
        %s192 = smul.addr %s188, 120
        %s193 = sadd.s32 %s191, %s192
        %s194 = smul.addr %s193, 8
        %s195 = scalar_lea.vmem %s0, %s194
        %p196 = pneg %p52
        %p197 = pneg %p49
        %p198 = scmp.lt.s32.totalorder %s21, 1
        %s199 = scalar_select %p198, %s21, 1
        %s200 = smul.addr %s199, 48
        %s201 = smul.addr %s200, 4
        %s202 = scalar_lea.vmem %s1, %s201
        %p203 = pneg %p78
        %p204 = pneg %p75
        %p205 = scmp.lt.s32.totalorder %s21, 1
        %s206 = scalar_select %p205, %s21, 1
        %s207 = smul.addr %s206, 2
        %s208 = smul.addr %s207, 8
        %s209 = scalar_lea.vmem %s2, %s208
        %p210 = pneg %p104
        %p211 = pneg %p101
        %p212 = pneg %p130
        %p213 = pneg %p127
        %s214 = sand.u32 %s117, 1
        %s215 = scalar_lea.sflag [#allocation4], %s214
        %s216 = sand.u32 %s117, 1
        %s217 = smul.addr %s216, 16
        %s218 = scalar_lea.vmem [#allocation3], %s217
        %s219 = smul.u32 10, %s22
        %p220 = scmp.lt.s32.totalorder %s21, 1
        %s221 = scalar_select %p220, %s21, 1
        %p222 = scmp.lt.s32.totalorder %s219, 19
        %s223 = scalar_select %p222, %s219, 19
        %s224 = smul.addr %s223, 6
        %s225 = smul.addr %s221, 120
        %s226 = sadd.s32 %s224, %s225
        %s227 = smul.addr %s226, 8
        %s228 = scalar_lea.vmem %s0, %s227
        %s229 = smul.u32 10, %s22
        %p230 = scmp.lt.s32.totalorder %s21, 1
        %s231 = scalar_select %p230, %s21, 1
        %s232 = smul.addr %s231, 48
        %s233 = smul.addr %s232, 4
        %s234 = scalar_lea.vmem %s1, %s233
        %p235 = scmp.lt.s32.totalorder %s21, 1
        %s236 = scalar_select %p235, %s21, 1
        %s237 = smul.addr %s236, 2
        %s238 = smul.addr %s237, 8
        %s239 = scalar_lea.vmem %s2, %s238
        %p241 = scmp.eq.s32.totalorder %s22, 0
        // Predicated region
        $region33: #{tpu_custom_call.1} parent=31 // pred_check
          %p242 = pneg %p241
        $region34: #{tpu_custom_call.1} parent=31 // pred_check_branch
          %244 = sbr.rel (%p242) target = $region36
        $region35: #{tpu_custom_call.1} parent=31 // pred_region
          %245 = vst [vmem:[#allocation2] sm:$0xff] 0.0
          %246 = vst [vmem:[#allocation2 + $0x8] sm:$0x3] 0.0
        $region36: #{tpu_custom_call.1} parent=31 // pred_fallthru
          _
        %v247 = vld [vmem:[%s234] sm:$0xff]
        %v248 = vld [vmem:[%s234 + $0x8] sm:$0xf]
        %v249 = vld [vmem:[%s234 + $0xc] sm:$0xff]
        %v250 = vld [vmem:[%s234 + $0x14] sm:$0xf]
        %v251 = vld [vmem:[%s234 + $0x18] sm:$0xff]
        %v252 = vld [vmem:[%s234 + $0x20] sm:$0xf]
        %v253 = vld [vmem:[%s234 + $0x24] sm:$0xff]
        %v254 = vld [vmem:[%s234 + $0x2c] sm:$0xf]
        %v255 = vld [vmem:[%s234 + $0x30] sm:$0xff]
        %v256 = vld [vmem:[%s234 + $0x38] sm:$0xf]
        %v257 = vld [vmem:[%s234 + $0x3c] sm:$0xff]
        %v258 = vld [vmem:[%s234 + $0x44] sm:$0xf]
        %v259 = vld [vmem:[%s234 + $0x48] sm:$0xff]
        %v260 = vld [vmem:[%s234 + $0x50] sm:$0xf]
        %v261 = vld [vmem:[%s234 + $0x54] sm:$0xff]
        %v262 = vld [vmem:[%s234 + $0x5c] sm:$0xf]
        %v263 = vld [vmem:[%s234 + $0x60] sm:$0xff]
        %v264 = vld [vmem:[%s234 + $0x68] sm:$0xf]
        %v265 = vld [vmem:[%s234 + $0x6c] sm:$0xff]
        %v266 = vld [vmem:[%s234 + $0x74] sm:$0xf]
        %v267 = vld [vmem:[%s234 + $0x78] sm:$0xff]
        %v268 = vld [vmem:[%s234 + $0x80] sm:$0xf]
        %v269 = vld [vmem:[%s234 + $0x84] sm:$0xff]
        %v270 = vld [vmem:[%s234 + $0x8c] sm:$0xf]
        %v271 = vld [vmem:[%s234 + $0x90] sm:$0xff]
        %v272 = vld [vmem:[%s234 + $0x98] sm:$0xf]
        %v273 = vld [vmem:[%s234 + $0x9c] sm:$0xff]
        %v274 = vld [vmem:[%s234 + $0xa4] sm:$0xf]
        %v275 = vld [vmem:[%s234 + $0xa8] sm:$0xff]
        %v276 = vld [vmem:[%s234 + $0xb0] sm:$0xf]
        %v277 = vld [vmem:[%s234 + $0xb4] sm:$0xff]
        %v278 = vld [vmem:[%s234 + $0xbc] sm:$0xf]
        %v279 = vld [vmem:[%s239] sm:$0xff]
        %v280 = vld [vmem:[%s239 + $0x8] sm:$0x3]
        %v281 = vld [vmem:[#allocation2] sm:$0xff]
        %v282 = vld [vmem:[#allocation2 + $0x8] sm:$0x3]
        %v283 = vld [vmem:[%s228] sm:$0xff]
        %v284 = vld [vmem:[%s228 + $0x8] sm:$0xff]
        %v285 = vld [vmem:[%s228 + $0x10] sm:$0xff]
        %v286 = vld [vmem:[%s228 + $0x18] sm:$0x3]
        %v287 = vld [vmem:[%s228 + $0x20] sm:$0x3]
        %v288 = vld [vmem:[%s228 + $0x28] sm:$0x3]
        %v289 = vpack.c.bf16 %v282, %v281
        %v322 = vunpack.c.l.b16 %v247
        %v323 = vunpack.c.h.b16 %v247
        %v324 = vunpack.c.l.b16 %v248
        %v325 = vunpack.c.l.b16 %v249
        %v326 = vunpack.c.h.b16 %v249
        %v327 = vunpack.c.l.b16 %v250
        %v328 = vunpack.c.l.b16 %v251
        %v329 = vunpack.c.h.b16 %v251
        %v330 = vunpack.c.l.b16 %v252
        %v331 = vunpack.c.l.b16 %v253
        %v332 = vunpack.c.h.b16 %v253
        %v333 = vunpack.c.l.b16 %v254
        %v334 = vunpack.c.l.b16 %v255
        %v335 = vunpack.c.h.b16 %v255
        %v336 = vunpack.c.l.b16 %v256
        %v337 = vunpack.c.l.b16 %v257
        %v338 = vunpack.c.h.b16 %v257
        %v339 = vunpack.c.l.b16 %v258
        %v340 = vunpack.c.l.b16 %v259
        %v341 = vunpack.c.h.b16 %v259
        %v342 = vunpack.c.l.b16 %v260
        %v343 = vunpack.c.l.b16 %v261
        %v344 = vunpack.c.h.b16 %v261
        %v345 = vunpack.c.l.b16 %v262
        %v346 = vunpack.c.l.b16 %v263
        %v347 = vunpack.c.h.b16 %v263
        %v348 = vunpack.c.l.b16 %v264
        %v349 = vunpack.c.l.b16 %v265
        %v350 = vunpack.c.h.b16 %v265
        %v351 = vunpack.c.l.b16 %v266
        %v352 = vunpack.c.l.b16 %v267
        %v353 = vunpack.c.h.b16 %v267
        %v354 = vunpack.c.l.b16 %v268
        %v355 = vunpack.c.l.b16 %v269
        %v356 = vunpack.c.h.b16 %v269
        %v357 = vunpack.c.l.b16 %v270
        %v358 = vunpack.c.l.b16 %v271
        %v359 = vunpack.c.h.b16 %v271
        %v360 = vunpack.c.l.b16 %v272
        %v361 = vunpack.c.l.b16 %v273
        %v362 = vunpack.c.h.b16 %v273
        %v363 = vunpack.c.l.b16 %v274
        %v364 = vunpack.c.l.b16 %v275
        %v365 = vunpack.c.h.b16 %v275
        %v366 = vunpack.c.l.b16 %v276
        %v367 = vunpack.c.l.b16 %v277
        %v368 = vunpack.c.h.b16 %v277
        %v369 = vunpack.c.l.b16 %v278
        %v370 = vpack.c.b16 %v325, %v322
        %v371 = vpack.c.b16 %v326, %v323
        %v372 = vpack.c.b16 %v327, %v324
        %v373 = vpack.c.b16 %v331, %v328
        %v374 = vpack.c.b16 %v332, %v329
        %v375 = vpack.c.b16 %v333, %v330
        %v376 = vpack.c.b16 %v337, %v334
        %v377 = vpack.c.b16 %v338, %v335
        %v378 = vpack.c.b16 %v339, %v336
        %v379 = vpack.c.b16 %v343, %v340
        %v380 = vpack.c.b16 %v344, %v341
        %v381 = vpack.c.b16 %v345, %v342
        %v382 = vpack.c.b16 %v349, %v346
        %v383 = vpack.c.b16 %v350, %v347
        %v384 = vpack.c.b16 %v351, %v348
        %v385 = vpack.c.b16 %v355, %v352
        %v386 = vpack.c.b16 %v356, %v353
        %v387 = vpack.c.b16 %v357, %v354
        %v388 = vpack.c.b16 %v361, %v358
        %v389 = vpack.c.b16 %v362, %v359
        %v390 = vpack.c.b16 %v363, %v360
        %v391 = vpack.c.b16 %v367, %v364
        %v392 = vpack.c.b16 %v368, %v365
        %v393 = vpack.c.b16 %v369, %v366
        %418 = vmatprep.subr.bf16.mxu0 %v371
        %419 = vmatpush1.bf16.msra.mxu0 %v370
        %420 = vmatprep.subr.bf16.mxu0 %v374
        %421 = vmatpush1.bf16.msra.mxu0 %v373
        %422 = vmatprep.subr.bf16.mxu0 %v377
        %423 = vmatpush1.bf16.msra.mxu0 %v376
        %424 = vmatprep.subr.bf16.mxu0 %v380
        %425 = vmatpush1.bf16.msra.mxu0 %v379
        %426 = vmatprep.subr.bf16.mxu0 %v383
        %427 = vmatpush1.bf16.msra.mxu0 %v382
        %428 = vmatprep.subr.bf16.mxu0 %v386
        %429 = vmatpush1.bf16.msra.mxu0 %v385
        %430 = vmatprep.subr.bf16.mxu0 %v389
        %431 = vmatpush1.bf16.msra.mxu0 %v388
        %432 = vmatprep.subr.bf16.mxu0 %v392
        %433 = vmatpush1.bf16.msra.mxu0 %v391
        %434 = vmatprep.subr.bf16.mxu0 0
        %435 = vmatpush1.bf16.msra.mxu0 0
        %436 = vmatprep.subr.bf16.mxu0 0
        %437 = vmatpush1.bf16.msra.mxu0 0
        %438 = vmatprep.subr.bf16.mxu0 0
        %439 = vmatpush1.bf16.msra.mxu0 0
        %440 = vmatprep.subr.bf16.mxu0 0
        %441 = vmatpush1.bf16.msra.mxu0 0
        %442 = vmatprep.subr.bf16.mxu0 0
        %443 = vmatpush1.bf16.msra.mxu0 0
        %444 = vmatprep.subr.bf16.mxu0 0
        %445 = vmatpush1.bf16.msra.mxu0 0
        %446 = vmatprep.subr.bf16.mxu0 0
        %447 = vmatpush1.bf16.msra.mxu0 0
        %448 = vmatprep.subr.bf16.mxu0 0
        %449 = vmatpush1.bf16.msra.mxu0 0
        %450 = vmatprep.mubr.bf16.mxu0 0
        %451 = vmatmul.mubr.bf16.gmra.mrb[0].mxu0 %v289
        %v452 = vpop.f32.mrb[0].mxu0
        %v453 = vadd.f32 0.0, %v452
        %v454 = vpop.f32.mrb[0].mxu0
        %v455 = vadd.f32 0.0, %v454
        %v456 = vpop.f32.mrb[0].mxu0
        %v457 = vadd.f32 0.0, %v456
        %v458 = vpop.f32.mrb[0].mxu0
        %v459 = vadd.f32 0.0, %v458
        %460 = vdwg.mxu0
        %461 = vmatprep.subr.bf16.mxu0 0
        %462 = vmatpush1.bf16.msra.mxu0 %v372
        %463 = vmatprep.subr.bf16.mxu0 0
        %464 = vmatpush1.bf16.msra.mxu0 %v375
        %465 = vmatprep.subr.bf16.mxu0 0
        %466 = vmatpush1.bf16.msra.mxu0 %v378
        %467 = vmatprep.subr.bf16.mxu0 0
        %468 = vmatpush1.bf16.msra.mxu0 %v381
        %469 = vmatprep.subr.bf16.mxu0 0
        %470 = vmatpush1.bf16.msra.mxu0 %v384
        %471 = vmatprep.subr.bf16.mxu0 0
        %472 = vmatpush1.bf16.msra.mxu0 %v387
        %473 = vmatprep.subr.bf16.mxu0 0
        %474 = vmatpush1.bf16.msra.mxu0 %v390
        %475 = vmatprep.subr.bf16.mxu0 0
        %476 = vmatpush1.bf16.msra.mxu0 %v393
        %477 = vmatprep.subr.bf16.mxu0 0
        %478 = vmatpush1.bf16.msra.mxu0 0
        %479 = vmatprep.subr.bf16.mxu0 0
        %480 = vmatpush1.bf16.msra.mxu0 0
        %481 = vmatprep.subr.bf16.mxu0 0
        %482 = vmatpush1.bf16.msra.mxu0 0
        %483 = vmatprep.subr.bf16.mxu0 0
        %484 = vmatpush1.bf16.msra.mxu0 0
        %485 = vmatprep.subr.bf16.mxu0 0
        %486 = vmatpush1.bf16.msra.mxu0 0
        %487 = vmatprep.subr.bf16.mxu0 0
        %488 = vmatpush1.bf16.msra.mxu0 0
        %489 = vmatprep.subr.bf16.mxu0 0
        %490 = vmatpush1.bf16.msra.mxu0 0
        %491 = vmatprep.subr.bf16.mxu0 0
        %492 = vmatpush1.bf16.msra.mxu0 0
        %493 = vmatprep.mubr.bf16.mxu0 0
        %494 = vmatmul.mubr.bf16.gmra.mrb[0].mxu0 %v289
        %v495 = vpop.f32.mrb[0].mxu0
        %v496 = vadd.f32 0.0, %v495
        %v497 = vpop.f32.mrb[0].mxu0
        %v498 = vpop.f32.mrb[0].mxu0
        %v499 = vadd.f32 0.0, %v498
        %v500 = vpop.f32.mrb[0].mxu0
        %501 = vdwg.mxu0
        %v502 = vadd.f32 %v283, %v453
        %v503 = vadd.f32 %v284, %v455
        %v504 = vadd.f32 %v286, %v457
        %v505 = vadd.f32 %v287, %v459
        %v506 = vxor.u32 %v502, 2147483648
        %v507 = vxor.u32 %v503, 2147483648
        %v508 = vxor.u32 %v504, 2147483648
        %v509 = vxor.u32 %v505, 2147483648
        %v510 = vmul.f32 %v506, 1.442695
        %v511 = vpow.pop %v510
        %v512 = vmul.f32 %v507, 1.442695
        %v513 = vpow.pop %v512
        %v514 = vmul.f32 %v508, 1.442695
        %v515 = vpow.pop %v514
        %v516 = vmul.f32 %v509, 1.442695
        %v517 = vpow.pop %v516
        %v518 = vadd.f32 %v511, 1.0
        %v519 = vadd.f32 %v513, 1.0
        %v520 = vadd.f32 %v515, 1.0
        %v521 = vadd.f32 %v517, 1.0
        %v522 = vrcp.pop %v518
        %v523 = vmul.f32 1.0, %v522
        %v524 = vrcp.pop %v519
        %v525 = vmul.f32 1.0, %v524
        %v526 = vrcp.pop %v520
        %v527 = vmul.f32 1.0, %v526
        %v528 = vrcp.pop %v521
        %v529 = vmul.f32 1.0, %v528
        %v530 = vadd.f32 %v496, %v279
        %v531 = vadd.f32 %v499, %v280
        %v532 = vmul.f32 %v523, %v530
        %v533 = vmul.f32 %v527, %v531
        %v534 = vadd.f32 %v285, %v532
        %v535 = vadd.f32 %v288, %v533
        %v536 = vtanh.pop %v534
        %v537 = vtanh.pop %v535
        %v538 = vsub.f32 %v281, %v536
        %v539 = vsub.f32 %v282, %v537
        %v540 = vmul.f32 %v525, %v538
        %v541 = vmul.f32 %v529, %v539
        %v542 = vadd.f32 %v536, %v540
        %v543 = vadd.f32 %v537, %v541
        %s544 = scalar_lea.vmem %s228, 48
        %v545 = vld [vmem:[%s544] sm:$0xff]
        %v546 = vld [vmem:[%s544 + $0x8] sm:$0xff]
        %v547 = vld [vmem:[%s544 + $0x10] sm:$0xff]
        %v548 = vld [vmem:[%s544 + $0x18] sm:$0x3]
        %v549 = vld [vmem:[%s544 + $0x20] sm:$0x3]
        %v550 = vld [vmem:[%s544 + $0x28] sm:$0x3]
        %v551 = vpack.c.bf16 %v543, %v542
        %552 = vmatprep.subr.bf16.mxu0 %v371
        %553 = vmatpush1.bf16.msra.mxu0 %v370
        %554 = vmatprep.subr.bf16.mxu0 %v374
        %555 = vmatpush1.bf16.msra.mxu0 %v373
        %556 = vmatprep.subr.bf16.mxu0 %v377
        %557 = vmatpush1.bf16.msra.mxu0 %v376
        %558 = vmatprep.subr.bf16.mxu0 %v380
        %559 = vmatpush1.bf16.msra.mxu0 %v379
        %560 = vmatprep.subr.bf16.mxu0 %v383
        %561 = vmatpush1.bf16.msra.mxu0 %v382
        %562 = vmatprep.subr.bf16.mxu0 %v386
        %563 = vmatpush1.bf16.msra.mxu0 %v385
        %564 = vmatprep.subr.bf16.mxu0 %v389
        %565 = vmatpush1.bf16.msra.mxu0 %v388
        %566 = vmatprep.subr.bf16.mxu0 %v392
        %567 = vmatpush1.bf16.msra.mxu0 %v391
        %568 = vmatprep.subr.bf16.mxu0 0
        %569 = vmatpush1.bf16.msra.mxu0 0
        %570 = vmatprep.subr.bf16.mxu0 0
        %571 = vmatpush1.bf16.msra.mxu0 0
        %572 = vmatprep.subr.bf16.mxu0 0
        %573 = vmatpush1.bf16.msra.mxu0 0
        %574 = vmatprep.subr.bf16.mxu0 0
        %575 = vmatpush1.bf16.msra.mxu0 0
        %576 = vmatprep.subr.bf16.mxu0 0
        %577 = vmatpush1.bf16.msra.mxu0 0
        %578 = vmatprep.subr.bf16.mxu0 0
        %579 = vmatpush1.bf16.msra.mxu0 0
        %580 = vmatprep.subr.bf16.mxu0 0
        %581 = vmatpush1.bf16.msra.mxu0 0
        %582 = vmatprep.subr.bf16.mxu0 0
        %583 = vmatpush1.bf16.msra.mxu0 0
        %584 = vmatprep.mubr.bf16.mxu0 0
        %585 = vmatmul.mubr.bf16.gmra.mrb[0].mxu0 %v551
        %v586 = vpop.f32.mrb[0].mxu0
        %v587 = vadd.f32 0.0, %v586
        %v588 = vpop.f32.mrb[0].mxu0
        %v589 = vadd.f32 0.0, %v588
        %v590 = vpop.f32.mrb[0].mxu0
        %v591 = vadd.f32 0.0, %v590
        %v592 = vpop.f32.mrb[0].mxu0
        %v593 = vadd.f32 0.0, %v592
        %594 = vdwg.mxu0
        %595 = vmatprep.subr.bf16.mxu0 0
        %596 = vmatpush1.bf16.msra.mxu0 %v372
        %597 = vmatprep.subr.bf16.mxu0 0
        %598 = vmatpush1.bf16.msra.mxu0 %v375
        %599 = vmatprep.subr.bf16.mxu0 0
        %600 = vmatpush1.bf16.msra.mxu0 %v378
        %601 = vmatprep.subr.bf16.mxu0 0
        %602 = vmatpush1.bf16.msra.mxu0 %v381
        %603 = vmatprep.subr.bf16.mxu0 0
        %604 = vmatpush1.bf16.msra.mxu0 %v384
        %605 = vmatprep.subr.bf16.mxu0 0
        %606 = vmatpush1.bf16.msra.mxu0 %v387
        %607 = vmatprep.subr.bf16.mxu0 0
        %608 = vmatpush1.bf16.msra.mxu0 %v390
        %609 = vmatprep.subr.bf16.mxu0 0
        %610 = vmatpush1.bf16.msra.mxu0 %v393
        %611 = vmatprep.subr.bf16.mxu0 0
        %612 = vmatpush1.bf16.msra.mxu0 0
        %613 = vmatprep.subr.bf16.mxu0 0
        %614 = vmatpush1.bf16.msra.mxu0 0
        %615 = vmatprep.subr.bf16.mxu0 0
        %616 = vmatpush1.bf16.msra.mxu0 0
        %617 = vmatprep.subr.bf16.mxu0 0
        %618 = vmatpush1.bf16.msra.mxu0 0
        %619 = vmatprep.subr.bf16.mxu0 0
        %620 = vmatpush1.bf16.msra.mxu0 0
        %621 = vmatprep.subr.bf16.mxu0 0
        %622 = vmatpush1.bf16.msra.mxu0 0
        %623 = vmatprep.subr.bf16.mxu0 0
        %624 = vmatpush1.bf16.msra.mxu0 0
        %625 = vmatprep.subr.bf16.mxu0 0
        %626 = vmatpush1.bf16.msra.mxu0 0
        %627 = vmatprep.mubr.bf16.mxu0 0
        %628 = vmatmul.mubr.bf16.gmra.mrb[0].mxu0 %v551
        %v629 = vpop.f32.mrb[0].mxu0
        %v630 = vadd.f32 0.0, %v629
        %v631 = vpop.f32.mrb[0].mxu0
        %v632 = vpop.f32.mrb[0].mxu0
        %v633 = vadd.f32 0.0, %v632
        %v634 = vpop.f32.mrb[0].mxu0
        %635 = vdwg.mxu0
        %v636 = vadd.f32 %v545, %v587
        %v637 = vadd.f32 %v546, %v589
        %v638 = vadd.f32 %v548, %v591
        %v639 = vadd.f32 %v549, %v593
        %v640 = vxor.u32 %v636, 2147483648
        %v641 = vxor.u32 %v637, 2147483648
        %v642 = vxor.u32 %v638, 2147483648
        %v643 = vxor.u32 %v639, 2147483648
        %v644 = vmul.f32 %v640, 1.442695
        %v645 = vpow.pop %v644
        %v646 = vmul.f32 %v641, 1.442695
        %v647 = vpow.pop %v646
        %v648 = vmul.f32 %v642, 1.442695
        %v649 = vpow.pop %v648
        %v650 = vmul.f32 %v643, 1.442695
        %v651 = vpow.pop %v650
        %v652 = vadd.f32 %v645, 1.0
        %v653 = vadd.f32 %v647, 1.0
        %v654 = vadd.f32 %v649, 1.0
        %v655 = vadd.f32 %v651, 1.0
        %v656 = vrcp.pop %v652
        %v657 = vmul.f32 1.0, %v656
        %v658 = vrcp.pop %v653
        %v659 = vmul.f32 1.0, %v658
        %v660 = vrcp.pop %v654
        %v661 = vmul.f32 1.0, %v660
        %v662 = vrcp.pop %v655
        %v663 = vmul.f32 1.0, %v662
        %v664 = vadd.f32 %v630, %v279
        %v665 = vadd.f32 %v633, %v280
        %v666 = vmul.f32 %v657, %v664
        %v667 = vmul.f32 %v661, %v665
        %v668 = vadd.f32 %v547, %v666
        %v669 = vadd.f32 %v550, %v667
        %v670 = vtanh.pop %v668
        %v671 = vtanh.pop %v669
        %v672 = vsub.f32 %v542, %v670
        %v673 = vsub.f32 %v543, %v671
        %v674 = vmul.f32 %v659, %v672
        %v675 = vmul.f32 %v663, %v673
        %v676 = vadd.f32 %v670, %v674
        %v677 = vadd.f32 %v671, %v675
        %s678 = scalar_lea.vmem %s228, 96
        %v679 = vld [vmem:[%s678] sm:$0xff]
        %v680 = vld [vmem:[%s678 + $0x8] sm:$0xff]
        %v681 = vld [vmem:[%s678 + $0x10] sm:$0xff]
        %v682 = vld [vmem:[%s678 + $0x18] sm:$0x3]
        %v683 = vld [vmem:[%s678 + $0x20] sm:$0x3]
        %v684 = vld [vmem:[%s678 + $0x28] sm:$0x3]
        %v685 = vpack.c.bf16 %v677, %v676
        %686 = vmatprep.subr.bf16.mxu0 %v371
        %687 = vmatpush1.bf16.msra.mxu0 %v370
        %688 = vmatprep.subr.bf16.mxu0 %v374
        %689 = vmatpush1.bf16.msra.mxu0 %v373
        %690 = vmatprep.subr.bf16.mxu0 %v377
        %691 = vmatpush1.bf16.msra.mxu0 %v376
        %692 = vmatprep.subr.bf16.mxu0 %v380
        %693 = vmatpush1.bf16.msra.mxu0 %v379
        %694 = vmatprep.subr.bf16.mxu0 %v383
        %695 = vmatpush1.bf16.msra.mxu0 %v382
        %696 = vmatprep.subr.bf16.mxu0 %v386
        %697 = vmatpush1.bf16.msra.mxu0 %v385
        %698 = vmatprep.subr.bf16.mxu0 %v389
        %699 = vmatpush1.bf16.msra.mxu0 %v388
        %700 = vmatprep.subr.bf16.mxu0 %v392
        %701 = vmatpush1.bf16.msra.mxu0 %v391
        %702 = vmatprep.subr.bf16.mxu0 0
        %703 = vmatpush1.bf16.msra.mxu0 0
        %704 = vmatprep.subr.bf16.mxu0 0
        %705 = vmatpush1.bf16.msra.mxu0 0
        %706 = vmatprep.subr.bf16.mxu0 0
        %707 = vmatpush1.bf16.msra.mxu0 0
        %708 = vmatprep.subr.bf16.mxu0 0
        %709 = vmatpush1.bf16.msra.mxu0 0
        %710 = vmatprep.subr.bf16.mxu0 0
        %711 = vmatpush1.bf16.msra.mxu0 0
        %712 = vmatprep.subr.bf16.mxu0 0
        %713 = vmatpush1.bf16.msra.mxu0 0
        %714 = vmatprep.subr.bf16.mxu0 0
        %715 = vmatpush1.bf16.msra.mxu0 0
        %716 = vmatprep.subr.bf16.mxu0 0
        %717 = vmatpush1.bf16.msra.mxu0 0
        %718 = vmatprep.mubr.bf16.mxu0 0
        %719 = vmatmul.mubr.bf16.gmra.mrb[0].mxu0 %v685
        %v720 = vpop.f32.mrb[0].mxu0
        %v721 = vadd.f32 0.0, %v720
        %v722 = vpop.f32.mrb[0].mxu0
        %v723 = vadd.f32 0.0, %v722
        %v724 = vpop.f32.mrb[0].mxu0
        %v725 = vadd.f32 0.0, %v724
        %v726 = vpop.f32.mrb[0].mxu0
        %v727 = vadd.f32 0.0, %v726
        %728 = vdwg.mxu0
        %729 = vmatprep.subr.bf16.mxu0 0
        %730 = vmatpush1.bf16.msra.mxu0 %v372
        %731 = vmatprep.subr.bf16.mxu0 0
        %732 = vmatpush1.bf16.msra.mxu0 %v375
        %733 = vmatprep.subr.bf16.mxu0 0
        %734 = vmatpush1.bf16.msra.mxu0 %v378
        %735 = vmatprep.subr.bf16.mxu0 0
        %736 = vmatpush1.bf16.msra.mxu0 %v381
        %737 = vmatprep.subr.bf16.mxu0 0
        %738 = vmatpush1.bf16.msra.mxu0 %v384
        %739 = vmatprep.subr.bf16.mxu0 0
        %740 = vmatpush1.bf16.msra.mxu0 %v387
        %741 = vmatprep.subr.bf16.mxu0 0
        %742 = vmatpush1.bf16.msra.mxu0 %v390
        %743 = vmatprep.subr.bf16.mxu0 0
        %744 = vmatpush1.bf16.msra.mxu0 %v393
        %745 = vmatprep.subr.bf16.mxu0 0
        %746 = vmatpush1.bf16.msra.mxu0 0
        %747 = vmatprep.subr.bf16.mxu0 0
        %748 = vmatpush1.bf16.msra.mxu0 0
        %749 = vmatprep.subr.bf16.mxu0 0
        %750 = vmatpush1.bf16.msra.mxu0 0
        %751 = vmatprep.subr.bf16.mxu0 0
        %752 = vmatpush1.bf16.msra.mxu0 0
        %753 = vmatprep.subr.bf16.mxu0 0
        %754 = vmatpush1.bf16.msra.mxu0 0
        %755 = vmatprep.subr.bf16.mxu0 0
        %756 = vmatpush1.bf16.msra.mxu0 0
        %757 = vmatprep.subr.bf16.mxu0 0
        %758 = vmatpush1.bf16.msra.mxu0 0
        %759 = vmatprep.subr.bf16.mxu0 0
        %760 = vmatpush1.bf16.msra.mxu0 0
        %761 = vmatprep.mubr.bf16.mxu0 0
        %762 = vmatmul.mubr.bf16.gmra.mrb[0].mxu0 %v685
        %v763 = vpop.f32.mrb[0].mxu0
        %v764 = vadd.f32 0.0, %v763
        %v765 = vpop.f32.mrb[0].mxu0
        %v766 = vpop.f32.mrb[0].mxu0
        %v767 = vadd.f32 0.0, %v766
        %v768 = vpop.f32.mrb[0].mxu0
        %769 = vdwg.mxu0
        %v770 = vadd.f32 %v679, %v721
        %v771 = vadd.f32 %v680, %v723
        %v772 = vadd.f32 %v682, %v725
        %v773 = vadd.f32 %v683, %v727
        %v774 = vxor.u32 %v770, 2147483648
        %v775 = vxor.u32 %v771, 2147483648
        %v776 = vxor.u32 %v772, 2147483648
        %v777 = vxor.u32 %v773, 2147483648
        %v778 = vmul.f32 %v774, 1.442695
        %v779 = vpow.pop %v778
        %v780 = vmul.f32 %v775, 1.442695
        %v781 = vpow.pop %v780
        %v782 = vmul.f32 %v776, 1.442695
        %v783 = vpow.pop %v782
        %v784 = vmul.f32 %v777, 1.442695
        %v785 = vpow.pop %v784
        %v786 = vadd.f32 %v779, 1.0
        %v787 = vadd.f32 %v781, 1.0
        %v788 = vadd.f32 %v783, 1.0
        %v789 = vadd.f32 %v785, 1.0
        %v790 = vrcp.pop %v786
        %v791 = vmul.f32 1.0, %v790
        %v792 = vrcp.pop %v787
        %v793 = vmul.f32 1.0, %v792
        %v794 = vrcp.pop %v788
        %v795 = vmul.f32 1.0, %v794
        %v796 = vrcp.pop %v789
        %v797 = vmul.f32 1.0, %v796
        %v798 = vadd.f32 %v764, %v279
        %v799 = vadd.f32 %v767, %v280
        %v800 = vmul.f32 %v791, %v798
        %v801 = vmul.f32 %v795, %v799
        %v802 = vadd.f32 %v681, %v800
        %v803 = vadd.f32 %v684, %v801
        %v804 = vtanh.pop %v802
        %v805 = vtanh.pop %v803
        %v806 = vsub.f32 %v676, %v804
        %v807 = vsub.f32 %v677, %v805
        %v808 = vmul.f32 %v793, %v806
        %v809 = vmul.f32 %v797, %v807
        %v810 = vadd.f32 %v804, %v808
        %v811 = vadd.f32 %v805, %v809
        %s812 = scalar_lea.vmem %s228, 144
        %v813 = vld [vmem:[%s812] sm:$0xff]
        %v814 = vld [vmem:[%s812 + $0x8] sm:$0xff]
        %v815 = vld [vmem:[%s812 + $0x10] sm:$0xff]
        %v816 = vld [vmem:[%s812 + $0x18] sm:$0x3]
        %v817 = vld [vmem:[%s812 + $0x20] sm:$0x3]
        %v818 = vld [vmem:[%s812 + $0x28] sm:$0x3]
        %v819 = vpack.c.bf16 %v811, %v810
        %820 = vmatprep.subr.bf16.mxu0 %v371
        %821 = vmatpush1.bf16.msra.mxu0 %v370
        %822 = vmatprep.subr.bf16.mxu0 %v374
        %823 = vmatpush1.bf16.msra.mxu0 %v373
        %824 = vmatprep.subr.bf16.mxu0 %v377
        %825 = vmatpush1.bf16.msra.mxu0 %v376
        %826 = vmatprep.subr.bf16.mxu0 %v380
        %827 = vmatpush1.bf16.msra.mxu0 %v379
        %828 = vmatprep.subr.bf16.mxu0 %v383
        %829 = vmatpush1.bf16.msra.mxu0 %v382
        %830 = vmatprep.subr.bf16.mxu0 %v386
        %831 = vmatpush1.bf16.msra.mxu0 %v385
        %832 = vmatprep.subr.bf16.mxu0 %v389
        %833 = vmatpush1.bf16.msra.mxu0 %v388
        %834 = vmatprep.subr.bf16.mxu0 %v392
        %835 = vmatpush1.bf16.msra.mxu0 %v391
        %836 = vmatprep.subr.bf16.mxu0 0
        %837 = vmatpush1.bf16.msra.mxu0 0
        %838 = vmatprep.subr.bf16.mxu0 0
        %839 = vmatpush1.bf16.msra.mxu0 0
        %840 = vmatprep.subr.bf16.mxu0 0
        %841 = vmatpush1.bf16.msra.mxu0 0
        %842 = vmatprep.subr.bf16.mxu0 0
        %843 = vmatpush1.bf16.msra.mxu0 0
        %844 = vmatprep.subr.bf16.mxu0 0
        %845 = vmatpush1.bf16.msra.mxu0 0
        %846 = vmatprep.subr.bf16.mxu0 0
        %847 = vmatpush1.bf16.msra.mxu0 0
        %848 = vmatprep.subr.bf16.mxu0 0
        %849 = vmatpush1.bf16.msra.mxu0 0
        %850 = vmatprep.subr.bf16.mxu0 0
        %851 = vmatpush1.bf16.msra.mxu0 0
        %852 = vmatprep.mubr.bf16.mxu0 0
        %853 = vmatmul.mubr.bf16.gmra.mrb[0].mxu0 %v819
        %v854 = vpop.f32.mrb[0].mxu0
        %v855 = vadd.f32 0.0, %v854
        %v856 = vpop.f32.mrb[0].mxu0
        %v857 = vadd.f32 0.0, %v856
        %v858 = vpop.f32.mrb[0].mxu0
        %v859 = vadd.f32 0.0, %v858
        %v860 = vpop.f32.mrb[0].mxu0
        %v861 = vadd.f32 0.0, %v860
        %862 = vdwg.mxu0
        %863 = vmatprep.subr.bf16.mxu0 0
        %864 = vmatpush1.bf16.msra.mxu0 %v372
        %865 = vmatprep.subr.bf16.mxu0 0
        %866 = vmatpush1.bf16.msra.mxu0 %v375
        %867 = vmatprep.subr.bf16.mxu0 0
        %868 = vmatpush1.bf16.msra.mxu0 %v378
        %869 = vmatprep.subr.bf16.mxu0 0
        %870 = vmatpush1.bf16.msra.mxu0 %v381
        %871 = vmatprep.subr.bf16.mxu0 0
        %872 = vmatpush1.bf16.msra.mxu0 %v384
        %873 = vmatprep.subr.bf16.mxu0 0
        %874 = vmatpush1.bf16.msra.mxu0 %v387
        %875 = vmatprep.subr.bf16.mxu0 0
        %876 = vmatpush1.bf16.msra.mxu0 %v390
        %877 = vmatprep.subr.bf16.mxu0 0
        %878 = vmatpush1.bf16.msra.mxu0 %v393
        %879 = vmatprep.subr.bf16.mxu0 0
        %880 = vmatpush1.bf16.msra.mxu0 0
        %881 = vmatprep.subr.bf16.mxu0 0
        %882 = vmatpush1.bf16.msra.mxu0 0
        %883 = vmatprep.subr.bf16.mxu0 0
        %884 = vmatpush1.bf16.msra.mxu0 0
        %885 = vmatprep.subr.bf16.mxu0 0
        %886 = vmatpush1.bf16.msra.mxu0 0
        %887 = vmatprep.subr.bf16.mxu0 0
        %888 = vmatpush1.bf16.msra.mxu0 0
        %889 = vmatprep.subr.bf16.mxu0 0
        %890 = vmatpush1.bf16.msra.mxu0 0
        %891 = vmatprep.subr.bf16.mxu0 0
        %892 = vmatpush1.bf16.msra.mxu0 0
        %893 = vmatprep.subr.bf16.mxu0 0
        %894 = vmatpush1.bf16.msra.mxu0 0
        %895 = vmatprep.mubr.bf16.mxu0 0
        %896 = vmatmul.mubr.bf16.gmra.mrb[0].mxu0 %v819
        %v897 = vpop.f32.mrb[0].mxu0
        %v898 = vadd.f32 0.0, %v897
        %v899 = vpop.f32.mrb[0].mxu0
        %v900 = vpop.f32.mrb[0].mxu0
        %v901 = vadd.f32 0.0, %v900
        %v902 = vpop.f32.mrb[0].mxu0
        %903 = vdwg.mxu0
        %v904 = vadd.f32 %v813, %v855
        %v905 = vadd.f32 %v814, %v857
        %v906 = vadd.f32 %v816, %v859
        %v907 = vadd.f32 %v817, %v861
        %v908 = vxor.u32 %v904, 2147483648
        %v909 = vxor.u32 %v905, 2147483648
        %v910 = vxor.u32 %v906, 2147483648
        %v911 = vxor.u32 %v907, 2147483648
        %v912 = vmul.f32 %v908, 1.442695
        %v913 = vpow.pop %v912
        %v914 = vmul.f32 %v909, 1.442695
        %v915 = vpow.pop %v914
        %v916 = vmul.f32 %v910, 1.442695
        %v917 = vpow.pop %v916
        %v918 = vmul.f32 %v911, 1.442695
        %v919 = vpow.pop %v918
        %v920 = vadd.f32 %v913, 1.0
        %v921 = vadd.f32 %v915, 1.0
        %v922 = vadd.f32 %v917, 1.0
        %v923 = vadd.f32 %v919, 1.0
        %v924 = vrcp.pop %v920
        %v925 = vmul.f32 1.0, %v924
        %v926 = vrcp.pop %v921
        %v927 = vmul.f32 1.0, %v926
        %v928 = vrcp.pop %v922
        %v929 = vmul.f32 1.0, %v928
        %v930 = vrcp.pop %v923
        %v931 = vmul.f32 1.0, %v930
        %v932 = vadd.f32 %v898, %v279
        %v933 = vadd.f32 %v901, %v280
        %v934 = vmul.f32 %v925, %v932
        %v935 = vmul.f32 %v929, %v933
        %v936 = vadd.f32 %v815, %v934
        %v937 = vadd.f32 %v818, %v935
        %v938 = vtanh.pop %v936
        %v939 = vtanh.pop %v937
        %v940 = vsub.f32 %v810, %v938
        %v941 = vsub.f32 %v811, %v939
        %v942 = vmul.f32 %v927, %v940
        %v943 = vmul.f32 %v931, %v941
        %v944 = vadd.f32 %v938, %v942
        %v945 = vadd.f32 %v939, %v943
        %s946 = scalar_lea.vmem %s228, 192
        %v947 = vld [vmem:[%s946] sm:$0xff]
        %v948 = vld [vmem:[%s946 + $0x8] sm:$0xff]
        %v949 = vld [vmem:[%s946 + $0x10] sm:$0xff]
        %v950 = vld [vmem:[%s946 + $0x18] sm:$0x3]
        %v951 = vld [vmem:[%s946 + $0x20] sm:$0x3]
        %v952 = vld [vmem:[%s946 + $0x28] sm:$0x3]
        %v953 = vpack.c.bf16 %v945, %v944
        %954 = vmatprep.subr.bf16.mxu0 %v371
        %955 = vmatpush1.bf16.msra.mxu0 %v370
        %956 = vmatprep.subr.bf16.mxu0 %v374
        %957 = vmatpush1.bf16.msra.mxu0 %v373
        %958 = vmatprep.subr.bf16.mxu0 %v377
        %959 = vmatpush1.bf16.msra.mxu0 %v376
        %960 = vmatprep.subr.bf16.mxu0 %v380
        %961 = vmatpush1.bf16.msra.mxu0 %v379
        %962 = vmatprep.subr.bf16.mxu0 %v383
        %963 = vmatpush1.bf16.msra.mxu0 %v382
        %964 = vmatprep.subr.bf16.mxu0 %v386
        %965 = vmatpush1.bf16.msra.mxu0 %v385
        %966 = vmatprep.subr.bf16.mxu0 %v389
        %967 = vmatpush1.bf16.msra.mxu0 %v388
        %968 = vmatprep.subr.bf16.mxu0 %v392
        %969 = vmatpush1.bf16.msra.mxu0 %v391
        %970 = vmatprep.subr.bf16.mxu0 0
        %971 = vmatpush1.bf16.msra.mxu0 0
        %972 = vmatprep.subr.bf16.mxu0 0
        %973 = vmatpush1.bf16.msra.mxu0 0
        %974 = vmatprep.subr.bf16.mxu0 0
        %975 = vmatpush1.bf16.msra.mxu0 0
        %976 = vmatprep.subr.bf16.mxu0 0
        %977 = vmatpush1.bf16.msra.mxu0 0
        %978 = vmatprep.subr.bf16.mxu0 0
        %979 = vmatpush1.bf16.msra.mxu0 0
        %980 = vmatprep.subr.bf16.mxu0 0
        %981 = vmatpush1.bf16.msra.mxu0 0
        %982 = vmatprep.subr.bf16.mxu0 0
        %983 = vmatpush1.bf16.msra.mxu0 0
        %984 = vmatprep.subr.bf16.mxu0 0
        %985 = vmatpush1.bf16.msra.mxu0 0
        %986 = vmatprep.mubr.bf16.mxu0 0
        %987 = vmatmul.mubr.bf16.gmra.mrb[0].mxu0 %v953
        %v988 = vpop.f32.mrb[0].mxu0
        %v989 = vadd.f32 0.0, %v988
        %v990 = vpop.f32.mrb[0].mxu0
        %v991 = vadd.f32 0.0, %v990
        %v992 = vpop.f32.mrb[0].mxu0
        %v993 = vadd.f32 0.0, %v992
        %v994 = vpop.f32.mrb[0].mxu0
        %v995 = vadd.f32 0.0, %v994
        %996 = vdwg.mxu0
        %997 = vmatprep.subr.bf16.mxu0 0
        %998 = vmatpush1.bf16.msra.mxu0 %v372
        %999 = vmatprep.subr.bf16.mxu0 0
        %1000 = vmatpush1.bf16.msra.mxu0 %v375
        %1001 = vmatprep.subr.bf16.mxu0 0
        %1002 = vmatpush1.bf16.msra.mxu0 %v378
        %1003 = vmatprep.subr.bf16.mxu0 0
        %1004 = vmatpush1.bf16.msra.mxu0 %v381
        %1005 = vmatprep.subr.bf16.mxu0 0
        %1006 = vmatpush1.bf16.msra.mxu0 %v384
        %1007 = vmatprep.subr.bf16.mxu0 0
        %1008 = vmatpush1.bf16.msra.mxu0 %v387
        %1009 = vmatprep.subr.bf16.mxu0 0
        %1010 = vmatpush1.bf16.msra.mxu0 %v390
        %1011 = vmatprep.subr.bf16.mxu0 0
        %1012 = vmatpush1.bf16.msra.mxu0 %v393
        %1013 = vmatprep.subr.bf16.mxu0 0
        %1014 = vmatpush1.bf16.msra.mxu0 0
        %1015 = vmatprep.subr.bf16.mxu0 0
        %1016 = vmatpush1.bf16.msra.mxu0 0
        %1017 = vmatprep.subr.bf16.mxu0 0
        %1018 = vmatpush1.bf16.msra.mxu0 0
        %1019 = vmatprep.subr.bf16.mxu0 0
        %1020 = vmatpush1.bf16.msra.mxu0 0
        %1021 = vmatprep.subr.bf16.mxu0 0
        %1022 = vmatpush1.bf16.msra.mxu0 0
        %1023 = vmatprep.subr.bf16.mxu0 0
        %1024 = vmatpush1.bf16.msra.mxu0 0
        %1025 = vmatprep.subr.bf16.mxu0 0
        %1026 = vmatpush1.bf16.msra.mxu0 0
        %1027 = vmatprep.subr.bf16.mxu0 0
        %1028 = vmatpush1.bf16.msra.mxu0 0
        %1029 = vmatprep.mubr.bf16.mxu0 0
        %1030 = vmatmul.mubr.bf16.gmra.mrb[0].mxu0 %v953
        %v1031 = vpop.f32.mrb[0].mxu0
        %v1032 = vadd.f32 0.0, %v1031
        %v1033 = vpop.f32.mrb[0].mxu0
        %v1034 = vpop.f32.mrb[0].mxu0
        %v1035 = vadd.f32 0.0, %v1034
        %v1036 = vpop.f32.mrb[0].mxu0
        %1037 = vdwg.mxu0
        %v1038 = vadd.f32 %v947, %v989
        %v1039 = vadd.f32 %v948, %v991
        %v1040 = vadd.f32 %v950, %v993
        %v1041 = vadd.f32 %v951, %v995
        %v1042 = vxor.u32 %v1038, 2147483648
        %v1043 = vxor.u32 %v1039, 2147483648
        %v1044 = vxor.u32 %v1040, 2147483648
        %v1045 = vxor.u32 %v1041, 2147483648
        %v1046 = vmul.f32 %v1042, 1.442695
        %v1047 = vpow.pop %v1046
        %v1048 = vmul.f32 %v1043, 1.442695
        %v1049 = vpow.pop %v1048
        %v1050 = vmul.f32 %v1044, 1.442695
        %v1051 = vpow.pop %v1050
        %v1052 = vmul.f32 %v1045, 1.442695
        %v1053 = vpow.pop %v1052
        %v1054 = vadd.f32 %v1047, 1.0
        %v1055 = vadd.f32 %v1049, 1.0
        %v1056 = vadd.f32 %v1051, 1.0
        %v1057 = vadd.f32 %v1053, 1.0
        %v1058 = vrcp.pop %v1054
        %v1059 = vmul.f32 1.0, %v1058
        %v1060 = vrcp.pop %v1055
        %v1061 = vmul.f32 1.0, %v1060
        %v1062 = vrcp.pop %v1056
        %v1063 = vmul.f32 1.0, %v1062
        %v1064 = vrcp.pop %v1057
        %v1065 = vmul.f32 1.0, %v1064
        %v1066 = vadd.f32 %v1032, %v279
        %v1067 = vadd.f32 %v1035, %v280
        %v1068 = vmul.f32 %v1059, %v1066
        %v1069 = vmul.f32 %v1063, %v1067
        %v1070 = vadd.f32 %v949, %v1068
        %v1071 = vadd.f32 %v952, %v1069
        %v1072 = vtanh.pop %v1070
        %v1073 = vtanh.pop %v1071
        %v1074 = vsub.f32 %v944, %v1072
        %v1075 = vsub.f32 %v945, %v1073
        %v1076 = vmul.f32 %v1061, %v1074
        %v1077 = vmul.f32 %v1065, %v1075
        %v1078 = vadd.f32 %v1072, %v1076
        %v1079 = vadd.f32 %v1073, %v1077
        %s1080 = scalar_lea.vmem %s228, 240
        %v1081 = vld [vmem:[%s1080] sm:$0xff]
        %v1082 = vld [vmem:[%s1080 + $0x8] sm:$0xff]
        %v1083 = vld [vmem:[%s1080 + $0x10] sm:$0xff]
        %v1084 = vld [vmem:[%s1080 + $0x18] sm:$0x3]
        %v1085 = vld [vmem:[%s1080 + $0x20] sm:$0x3]
        %v1086 = vld [vmem:[%s1080 + $0x28] sm:$0x3]
        %v1087 = vpack.c.bf16 %v1079, %v1078
        %1088 = vmatprep.subr.bf16.mxu0 %v371
        %1089 = vmatpush1.bf16.msra.mxu0 %v370
        %1090 = vmatprep.subr.bf16.mxu0 %v374
        %1091 = vmatpush1.bf16.msra.mxu0 %v373
        %1092 = vmatprep.subr.bf16.mxu0 %v377
        %1093 = vmatpush1.bf16.msra.mxu0 %v376
        %1094 = vmatprep.subr.bf16.mxu0 %v380
        %1095 = vmatpush1.bf16.msra.mxu0 %v379
        %1096 = vmatprep.subr.bf16.mxu0 %v383
        %1097 = vmatpush1.bf16.msra.mxu0 %v382
        %1098 = vmatprep.subr.bf16.mxu0 %v386
        %1099 = vmatpush1.bf16.msra.mxu0 %v385
        %1100 = vmatprep.subr.bf16.mxu0 %v389
        %1101 = vmatpush1.bf16.msra.mxu0 %v388
        %1102 = vmatprep.subr.bf16.mxu0 %v392
        %1103 = vmatpush1.bf16.msra.mxu0 %v391
        %1104 = vmatprep.subr.bf16.mxu0 0
        %1105 = vmatpush1.bf16.msra.mxu0 0
        %1106 = vmatprep.subr.bf16.mxu0 0
        %1107 = vmatpush1.bf16.msra.mxu0 0
        %1108 = vmatprep.subr.bf16.mxu0 0
        %1109 = vmatpush1.bf16.msra.mxu0 0
        %1110 = vmatprep.subr.bf16.mxu0 0
        %1111 = vmatpush1.bf16.msra.mxu0 0
        %1112 = vmatprep.subr.bf16.mxu0 0
        %1113 = vmatpush1.bf16.msra.mxu0 0
        %1114 = vmatprep.subr.bf16.mxu0 0
        %1115 = vmatpush1.bf16.msra.mxu0 0
        %1116 = vmatprep.subr.bf16.mxu0 0
        %1117 = vmatpush1.bf16.msra.mxu0 0
        %1118 = vmatprep.subr.bf16.mxu0 0
        %1119 = vmatpush1.bf16.msra.mxu0 0
        %1120 = vmatprep.mubr.bf16.mxu0 0
        %1121 = vmatmul.mubr.bf16.gmra.mrb[0].mxu0 %v1087
        %v1122 = vpop.f32.mrb[0].mxu0
        %v1123 = vadd.f32 0.0, %v1122
        %v1124 = vpop.f32.mrb[0].mxu0
        %v1125 = vadd.f32 0.0, %v1124
        %v1126 = vpop.f32.mrb[0].mxu0
        %v1127 = vadd.f32 0.0, %v1126
        %v1128 = vpop.f32.mrb[0].mxu0
        %v1129 = vadd.f32 0.0, %v1128
        %1130 = vdwg.mxu0
        %1131 = vmatprep.subr.bf16.mxu0 0
        %1132 = vmatpush1.bf16.msra.mxu0 %v372
        %1133 = vmatprep.subr.bf16.mxu0 0
        %1134 = vmatpush1.bf16.msra.mxu0 %v375
        %1135 = vmatprep.subr.bf16.mxu0 0
        %1136 = vmatpush1.bf16.msra.mxu0 %v378
        %1137 = vmatprep.subr.bf16.mxu0 0
        %1138 = vmatpush1.bf16.msra.mxu0 %v381
        %1139 = vmatprep.subr.bf16.mxu0 0
        %1140 = vmatpush1.bf16.msra.mxu0 %v384
        %1141 = vmatprep.subr.bf16.mxu0 0
        %1142 = vmatpush1.bf16.msra.mxu0 %v387
        %1143 = vmatprep.subr.bf16.mxu0 0
        %1144 = vmatpush1.bf16.msra.mxu0 %v390
        %1145 = vmatprep.subr.bf16.mxu0 0
        %1146 = vmatpush1.bf16.msra.mxu0 %v393
        %1147 = vmatprep.subr.bf16.mxu0 0
        %1148 = vmatpush1.bf16.msra.mxu0 0
        %1149 = vmatprep.subr.bf16.mxu0 0
        %1150 = vmatpush1.bf16.msra.mxu0 0
        %1151 = vmatprep.subr.bf16.mxu0 0
        %1152 = vmatpush1.bf16.msra.mxu0 0
        %1153 = vmatprep.subr.bf16.mxu0 0
        %1154 = vmatpush1.bf16.msra.mxu0 0
        %1155 = vmatprep.subr.bf16.mxu0 0
        %1156 = vmatpush1.bf16.msra.mxu0 0
        %1157 = vmatprep.subr.bf16.mxu0 0
        %1158 = vmatpush1.bf16.msra.mxu0 0
        %1159 = vmatprep.subr.bf16.mxu0 0
        %1160 = vmatpush1.bf16.msra.mxu0 0
        %1161 = vmatprep.subr.bf16.mxu0 0
        %1162 = vmatpush1.bf16.msra.mxu0 0
        %1163 = vmatprep.mubr.bf16.mxu0 0
        %1164 = vmatmul.mubr.bf16.gmra.mrb[0].mxu0 %v1087
        %v1165 = vpop.f32.mrb[0].mxu0
        %v1166 = vadd.f32 0.0, %v1165
        %v1167 = vpop.f32.mrb[0].mxu0
        %v1168 = vpop.f32.mrb[0].mxu0
        %v1169 = vadd.f32 0.0, %v1168
        %v1170 = vpop.f32.mrb[0].mxu0
        %1171 = vdwg.mxu0
        %v1172 = vadd.f32 %v1081, %v1123
        %v1173 = vadd.f32 %v1082, %v1125
        %v1174 = vadd.f32 %v1084, %v1127
        %v1175 = vadd.f32 %v1085, %v1129
        %v1176 = vxor.u32 %v1172, 2147483648
        %v1177 = vxor.u32 %v1173, 2147483648
        %v1178 = vxor.u32 %v1174, 2147483648
        %v1179 = vxor.u32 %v1175, 2147483648
        %v1180 = vmul.f32 %v1176, 1.442695
        %v1181 = vpow.pop %v1180
        %v1182 = vmul.f32 %v1177, 1.442695
        %v1183 = vpow.pop %v1182
        %v1184 = vmul.f32 %v1178, 1.442695
        %v1185 = vpow.pop %v1184
        %v1186 = vmul.f32 %v1179, 1.442695
        %v1187 = vpow.pop %v1186
        %v1188 = vadd.f32 %v1181, 1.0
        %v1189 = vadd.f32 %v1183, 1.0
        %v1190 = vadd.f32 %v1185, 1.0
        %v1191 = vadd.f32 %v1187, 1.0
        %v1192 = vrcp.pop %v1188
        %v1193 = vmul.f32 1.0, %v1192
        %v1194 = vrcp.pop %v1189
        %v1195 = vmul.f32 1.0, %v1194
        %v1196 = vrcp.pop %v1190
        %v1197 = vmul.f32 1.0, %v1196
        %v1198 = vrcp.pop %v1191
        %v1199 = vmul.f32 1.0, %v1198
        %v1200 = vadd.f32 %v1166, %v279
        %v1201 = vadd.f32 %v1169, %v280
        %v1202 = vmul.f32 %v1193, %v1200
        %v1203 = vmul.f32 %v1197, %v1201
        %v1204 = vadd.f32 %v1083, %v1202
        %v1205 = vadd.f32 %v1086, %v1203
        %v1206 = vtanh.pop %v1204
        %v1207 = vtanh.pop %v1205
        %v1208 = vsub.f32 %v1078, %v1206
        %v1209 = vsub.f32 %v1079, %v1207
        %v1210 = vmul.f32 %v1195, %v1208
        %v1211 = vmul.f32 %v1199, %v1209
        %v1212 = vadd.f32 %v1206, %v1210
        %v1213 = vadd.f32 %v1207, %v1211
        %s1214 = scalar_lea.vmem %s228, 288
        %v1215 = vld [vmem:[%s1214] sm:$0xff]
        %v1216 = vld [vmem:[%s1214 + $0x8] sm:$0xff]
        %v1217 = vld [vmem:[%s1214 + $0x10] sm:$0xff]
        %v1218 = vld [vmem:[%s1214 + $0x18] sm:$0x3]
        %v1219 = vld [vmem:[%s1214 + $0x20] sm:$0x3]
        %v1220 = vld [vmem:[%s1214 + $0x28] sm:$0x3]
        %v1221 = vpack.c.bf16 %v1213, %v1212
        %1222 = vmatprep.subr.bf16.mxu0 %v371
        %1223 = vmatpush1.bf16.msra.mxu0 %v370
        %1224 = vmatprep.subr.bf16.mxu0 %v374
        %1225 = vmatpush1.bf16.msra.mxu0 %v373
        %1226 = vmatprep.subr.bf16.mxu0 %v377
        %1227 = vmatpush1.bf16.msra.mxu0 %v376
        %1228 = vmatprep.subr.bf16.mxu0 %v380
        %1229 = vmatpush1.bf16.msra.mxu0 %v379
        %1230 = vmatprep.subr.bf16.mxu0 %v383
        %1231 = vmatpush1.bf16.msra.mxu0 %v382
        %1232 = vmatprep.subr.bf16.mxu0 %v386
        %1233 = vmatpush1.bf16.msra.mxu0 %v385
        %1234 = vmatprep.subr.bf16.mxu0 %v389
        %1235 = vmatpush1.bf16.msra.mxu0 %v388
        %1236 = vmatprep.subr.bf16.mxu0 %v392
        %1237 = vmatpush1.bf16.msra.mxu0 %v391
        %1238 = vmatprep.subr.bf16.mxu0 0
        %1239 = vmatpush1.bf16.msra.mxu0 0
        %1240 = vmatprep.subr.bf16.mxu0 0
        %1241 = vmatpush1.bf16.msra.mxu0 0
        %1242 = vmatprep.subr.bf16.mxu0 0
        %1243 = vmatpush1.bf16.msra.mxu0 0
        %1244 = vmatprep.subr.bf16.mxu0 0
        %1245 = vmatpush1.bf16.msra.mxu0 0
        %1246 = vmatprep.subr.bf16.mxu0 0
        %1247 = vmatpush1.bf16.msra.mxu0 0
        %1248 = vmatprep.subr.bf16.mxu0 0
        %1249 = vmatpush1.bf16.msra.mxu0 0
        %1250 = vmatprep.subr.bf16.mxu0 0
        %1251 = vmatpush1.bf16.msra.mxu0 0
        %1252 = vmatprep.subr.bf16.mxu0 0
        %1253 = vmatpush1.bf16.msra.mxu0 0
        %1254 = vmatprep.mubr.bf16.mxu0 0
        %1255 = vmatmul.mubr.bf16.gmra.mrb[0].mxu0 %v1221
        %v1256 = vpop.f32.mrb[0].mxu0
        %v1257 = vadd.f32 0.0, %v1256
        %v1258 = vpop.f32.mrb[0].mxu0
        %v1259 = vadd.f32 0.0, %v1258
        %v1260 = vpop.f32.mrb[0].mxu0
        %v1261 = vadd.f32 0.0, %v1260
        %v1262 = vpop.f32.mrb[0].mxu0
        %v1263 = vadd.f32 0.0, %v1262
        %1264 = vdwg.mxu0
        %1265 = vmatprep.subr.bf16.mxu0 0
        %1266 = vmatpush1.bf16.msra.mxu0 %v372
        %1267 = vmatprep.subr.bf16.mxu0 0
        %1268 = vmatpush1.bf16.msra.mxu0 %v375
        %1269 = vmatprep.subr.bf16.mxu0 0
        %1270 = vmatpush1.bf16.msra.mxu0 %v378
        %1271 = vmatprep.subr.bf16.mxu0 0
        %1272 = vmatpush1.bf16.msra.mxu0 %v381
        %1273 = vmatprep.subr.bf16.mxu0 0
        %1274 = vmatpush1.bf16.msra.mxu0 %v384
        %1275 = vmatprep.subr.bf16.mxu0 0
        %1276 = vmatpush1.bf16.msra.mxu0 %v387
        %1277 = vmatprep.subr.bf16.mxu0 0
        %1278 = vmatpush1.bf16.msra.mxu0 %v390
        %1279 = vmatprep.subr.bf16.mxu0 0
        %1280 = vmatpush1.bf16.msra.mxu0 %v393
        %1281 = vmatprep.subr.bf16.mxu0 0
        %1282 = vmatpush1.bf16.msra.mxu0 0
        %1283 = vmatprep.subr.bf16.mxu0 0
        %1284 = vmatpush1.bf16.msra.mxu0 0
        %1285 = vmatprep.subr.bf16.mxu0 0
        %1286 = vmatpush1.bf16.msra.mxu0 0
        %1287 = vmatprep.subr.bf16.mxu0 0
        %1288 = vmatpush1.bf16.msra.mxu0 0
        %1289 = vmatprep.subr.bf16.mxu0 0
        %1290 = vmatpush1.bf16.msra.mxu0 0
        %1291 = vmatprep.subr.bf16.mxu0 0
        %1292 = vmatpush1.bf16.msra.mxu0 0
        %1293 = vmatprep.subr.bf16.mxu0 0
        %1294 = vmatpush1.bf16.msra.mxu0 0
        %1295 = vmatprep.subr.bf16.mxu0 0
        %1296 = vmatpush1.bf16.msra.mxu0 0
        %1297 = vmatprep.mubr.bf16.mxu0 0
        %1298 = vmatmul.mubr.bf16.gmra.mrb[0].mxu0 %v1221
        %v1299 = vpop.f32.mrb[0].mxu0
        %v1300 = vadd.f32 0.0, %v1299
        %v1301 = vpop.f32.mrb[0].mxu0
        %v1302 = vpop.f32.mrb[0].mxu0
        %v1303 = vadd.f32 0.0, %v1302
        %v1304 = vpop.f32.mrb[0].mxu0
        %1305 = vdwg.mxu0
        %v1306 = vadd.f32 %v1215, %v1257
        %v1307 = vadd.f32 %v1216, %v1259
        %v1308 = vadd.f32 %v1218, %v1261
        %v1309 = vadd.f32 %v1219, %v1263
        %v1310 = vxor.u32 %v1306, 2147483648
        %v1311 = vxor.u32 %v1307, 2147483648
        %v1312 = vxor.u32 %v1308, 2147483648
        %v1313 = vxor.u32 %v1309, 2147483648
        %v1314 = vmul.f32 %v1310, 1.442695
        %v1315 = vpow.pop %v1314
        %v1316 = vmul.f32 %v1311, 1.442695
        %v1317 = vpow.pop %v1316
        %v1318 = vmul.f32 %v1312, 1.442695
        %v1319 = vpow.pop %v1318
        %v1320 = vmul.f32 %v1313, 1.442695
        %v1321 = vpow.pop %v1320
        %v1322 = vadd.f32 %v1315, 1.0
        %v1323 = vadd.f32 %v1317, 1.0
        %v1324 = vadd.f32 %v1319, 1.0
        %v1325 = vadd.f32 %v1321, 1.0
        %v1326 = vrcp.pop %v1322
        %v1327 = vmul.f32 1.0, %v1326
        %v1328 = vrcp.pop %v1323
        %v1329 = vmul.f32 1.0, %v1328
        %v1330 = vrcp.pop %v1324
        %v1331 = vmul.f32 1.0, %v1330
        %v1332 = vrcp.pop %v1325
        %v1333 = vmul.f32 1.0, %v1332
        %v1334 = vadd.f32 %v1300, %v279
        %v1335 = vadd.f32 %v1303, %v280
        %v1336 = vmul.f32 %v1327, %v1334
        %v1337 = vmul.f32 %v1331, %v1335
        %v1338 = vadd.f32 %v1217, %v1336
        %v1339 = vadd.f32 %v1220, %v1337
        %v1340 = vtanh.pop %v1338
        %v1341 = vtanh.pop %v1339
        %v1342 = vsub.f32 %v1212, %v1340
        %v1343 = vsub.f32 %v1213, %v1341
        %v1344 = vmul.f32 %v1329, %v1342
        %v1345 = vmul.f32 %v1333, %v1343
        %v1346 = vadd.f32 %v1340, %v1344
        %v1347 = vadd.f32 %v1341, %v1345
        %s1348 = scalar_lea.vmem %s228, 336
        %v1349 = vld [vmem:[%s1348] sm:$0xff]
        %v1350 = vld [vmem:[%s1348 + $0x8] sm:$0xff]
        %v1351 = vld [vmem:[%s1348 + $0x10] sm:$0xff]
        %v1352 = vld [vmem:[%s1348 + $0x18] sm:$0x3]
        %v1353 = vld [vmem:[%s1348 + $0x20] sm:$0x3]
        %v1354 = vld [vmem:[%s1348 + $0x28] sm:$0x3]
        %v1355 = vpack.c.bf16 %v1347, %v1346
        %1356 = vmatprep.subr.bf16.mxu0 %v371
        %1357 = vmatpush1.bf16.msra.mxu0 %v370
        %1358 = vmatprep.subr.bf16.mxu0 %v374
        %1359 = vmatpush1.bf16.msra.mxu0 %v373
        %1360 = vmatprep.subr.bf16.mxu0 %v377
        %1361 = vmatpush1.bf16.msra.mxu0 %v376
        %1362 = vmatprep.subr.bf16.mxu0 %v380
        %1363 = vmatpush1.bf16.msra.mxu0 %v379
        %1364 = vmatprep.subr.bf16.mxu0 %v383
        %1365 = vmatpush1.bf16.msra.mxu0 %v382
        %1366 = vmatprep.subr.bf16.mxu0 %v386
        %1367 = vmatpush1.bf16.msra.mxu0 %v385
        %1368 = vmatprep.subr.bf16.mxu0 %v389
        %1369 = vmatpush1.bf16.msra.mxu0 %v388
        %1370 = vmatprep.subr.bf16.mxu0 %v392
        %1371 = vmatpush1.bf16.msra.mxu0 %v391
        %1372 = vmatprep.subr.bf16.mxu0 0
        %1373 = vmatpush1.bf16.msra.mxu0 0
        %1374 = vmatprep.subr.bf16.mxu0 0
        %1375 = vmatpush1.bf16.msra.mxu0 0
        %1376 = vmatprep.subr.bf16.mxu0 0
        %1377 = vmatpush1.bf16.msra.mxu0 0
        %1378 = vmatprep.subr.bf16.mxu0 0
        %1379 = vmatpush1.bf16.msra.mxu0 0
        %1380 = vmatprep.subr.bf16.mxu0 0
        %1381 = vmatpush1.bf16.msra.mxu0 0
        %1382 = vmatprep.subr.bf16.mxu0 0
        %1383 = vmatpush1.bf16.msra.mxu0 0
        %1384 = vmatprep.subr.bf16.mxu0 0
        %1385 = vmatpush1.bf16.msra.mxu0 0
        %1386 = vmatprep.subr.bf16.mxu0 0
        %1387 = vmatpush1.bf16.msra.mxu0 0
        %1388 = vmatprep.mubr.bf16.mxu0 0
        %1389 = vmatmul.mubr.bf16.gmra.mrb[0].mxu0 %v1355
        %v1390 = vpop.f32.mrb[0].mxu0
        %v1391 = vadd.f32 0.0, %v1390
        %v1392 = vpop.f32.mrb[0].mxu0
        %v1393 = vadd.f32 0.0, %v1392
        %v1394 = vpop.f32.mrb[0].mxu0
        %v1395 = vadd.f32 0.0, %v1394
        %v1396 = vpop.f32.mrb[0].mxu0
        %v1397 = vadd.f32 0.0, %v1396
        %1398 = vdwg.mxu0
        %1399 = vmatprep.subr.bf16.mxu0 0
        %1400 = vmatpush1.bf16.msra.mxu0 %v372
        %1401 = vmatprep.subr.bf16.mxu0 0
        %1402 = vmatpush1.bf16.msra.mxu0 %v375
        %1403 = vmatprep.subr.bf16.mxu0 0
        %1404 = vmatpush1.bf16.msra.mxu0 %v378
        %1405 = vmatprep.subr.bf16.mxu0 0
        %1406 = vmatpush1.bf16.msra.mxu0 %v381
        %1407 = vmatprep.subr.bf16.mxu0 0
        %1408 = vmatpush1.bf16.msra.mxu0 %v384
        %1409 = vmatprep.subr.bf16.mxu0 0
        %1410 = vmatpush1.bf16.msra.mxu0 %v387
        %1411 = vmatprep.subr.bf16.mxu0 0
        %1412 = vmatpush1.bf16.msra.mxu0 %v390
        %1413 = vmatprep.subr.bf16.mxu0 0
        %1414 = vmatpush1.bf16.msra.mxu0 %v393
        %1415 = vmatprep.subr.bf16.mxu0 0
        %1416 = vmatpush1.bf16.msra.mxu0 0
        %1417 = vmatprep.subr.bf16.mxu0 0
        %1418 = vmatpush1.bf16.msra.mxu0 0
        %1419 = vmatprep.subr.bf16.mxu0 0
        %1420 = vmatpush1.bf16.msra.mxu0 0
        %1421 = vmatprep.subr.bf16.mxu0 0
        %1422 = vmatpush1.bf16.msra.mxu0 0
        %1423 = vmatprep.subr.bf16.mxu0 0
        %1424 = vmatpush1.bf16.msra.mxu0 0
        %1425 = vmatprep.subr.bf16.mxu0 0
        %1426 = vmatpush1.bf16.msra.mxu0 0
        %1427 = vmatprep.subr.bf16.mxu0 0
        %1428 = vmatpush1.bf16.msra.mxu0 0
        %1429 = vmatprep.subr.bf16.mxu0 0
        %1430 = vmatpush1.bf16.msra.mxu0 0
        %1431 = vmatprep.mubr.bf16.mxu0 0
        %1432 = vmatmul.mubr.bf16.gmra.mrb[0].mxu0 %v1355
        %v1433 = vpop.f32.mrb[0].mxu0
        %v1434 = vadd.f32 0.0, %v1433
        %v1435 = vpop.f32.mrb[0].mxu0
        %v1436 = vpop.f32.mrb[0].mxu0
        %v1437 = vadd.f32 0.0, %v1436
        %v1438 = vpop.f32.mrb[0].mxu0
        %1439 = vdwg.mxu0
        %v1440 = vadd.f32 %v1349, %v1391
        %v1441 = vadd.f32 %v1350, %v1393
        %v1442 = vadd.f32 %v1352, %v1395
        %v1443 = vadd.f32 %v1353, %v1397
        %v1444 = vxor.u32 %v1440, 2147483648
        %v1445 = vxor.u32 %v1441, 2147483648
        %v1446 = vxor.u32 %v1442, 2147483648
        %v1447 = vxor.u32 %v1443, 2147483648
        %v1448 = vmul.f32 %v1444, 1.442695
        %v1449 = vpow.pop %v1448
        %v1450 = vmul.f32 %v1445, 1.442695
        %v1451 = vpow.pop %v1450
        %v1452 = vmul.f32 %v1446, 1.442695
        %v1453 = vpow.pop %v1452
        %v1454 = vmul.f32 %v1447, 1.442695
        %v1455 = vpow.pop %v1454
        %v1456 = vadd.f32 %v1449, 1.0
        %v1457 = vadd.f32 %v1451, 1.0
        %v1458 = vadd.f32 %v1453, 1.0
        %v1459 = vadd.f32 %v1455, 1.0
        %v1460 = vrcp.pop %v1456
        %v1461 = vmul.f32 1.0, %v1460
        %v1462 = vrcp.pop %v1457
        %v1463 = vmul.f32 1.0, %v1462
        %v1464 = vrcp.pop %v1458
        %v1465 = vmul.f32 1.0, %v1464
        %v1466 = vrcp.pop %v1459
        %v1467 = vmul.f32 1.0, %v1466
        %v1468 = vadd.f32 %v1434, %v279
        %v1469 = vadd.f32 %v1437, %v280
        %v1470 = vmul.f32 %v1461, %v1468
        %v1471 = vmul.f32 %v1465, %v1469
        %v1472 = vadd.f32 %v1351, %v1470
        %v1473 = vadd.f32 %v1354, %v1471
        %v1474 = vtanh.pop %v1472
        %v1475 = vtanh.pop %v1473
        %v1476 = vsub.f32 %v1346, %v1474
        %v1477 = vsub.f32 %v1347, %v1475
        %v1478 = vmul.f32 %v1463, %v1476
        %v1479 = vmul.f32 %v1467, %v1477
        %v1480 = vadd.f32 %v1474, %v1478
        %v1481 = vadd.f32 %v1475, %v1479
        %s1482 = scalar_lea.vmem %s228, 384
        %v1483 = vld [vmem:[%s1482] sm:$0xff]
        %v1484 = vld [vmem:[%s1482 + $0x8] sm:$0xff]
        %v1485 = vld [vmem:[%s1482 + $0x10] sm:$0xff]
        %v1486 = vld [vmem:[%s1482 + $0x18] sm:$0x3]
        %v1487 = vld [vmem:[%s1482 + $0x20] sm:$0x3]
        %v1488 = vld [vmem:[%s1482 + $0x28] sm:$0x3]
        %v1489 = vpack.c.bf16 %v1481, %v1480
        %1490 = vmatprep.subr.bf16.mxu0 %v371
        %1491 = vmatpush1.bf16.msra.mxu0 %v370
        %1492 = vmatprep.subr.bf16.mxu0 %v374
        %1493 = vmatpush1.bf16.msra.mxu0 %v373
        %1494 = vmatprep.subr.bf16.mxu0 %v377
        %1495 = vmatpush1.bf16.msra.mxu0 %v376
        %1496 = vmatprep.subr.bf16.mxu0 %v380
        %1497 = vmatpush1.bf16.msra.mxu0 %v379
        %1498 = vmatprep.subr.bf16.mxu0 %v383
        %1499 = vmatpush1.bf16.msra.mxu0 %v382
        %1500 = vmatprep.subr.bf16.mxu0 %v386
        %1501 = vmatpush1.bf16.msra.mxu0 %v385
        %1502 = vmatprep.subr.bf16.mxu0 %v389
        %1503 = vmatpush1.bf16.msra.mxu0 %v388
        %1504 = vmatprep.subr.bf16.mxu0 %v392
        %1505 = vmatpush1.bf16.msra.mxu0 %v391
        %1506 = vmatprep.subr.bf16.mxu0 0
        %1507 = vmatpush1.bf16.msra.mxu0 0
        %1508 = vmatprep.subr.bf16.mxu0 0
        %1509 = vmatpush1.bf16.msra.mxu0 0
        %1510 = vmatprep.subr.bf16.mxu0 0
        %1511 = vmatpush1.bf16.msra.mxu0 0
        %1512 = vmatprep.subr.bf16.mxu0 0
        %1513 = vmatpush1.bf16.msra.mxu0 0
        %1514 = vmatprep.subr.bf16.mxu0 0
        %1515 = vmatpush1.bf16.msra.mxu0 0
        %1516 = vmatprep.subr.bf16.mxu0 0
        %1517 = vmatpush1.bf16.msra.mxu0 0
        %1518 = vmatprep.subr.bf16.mxu0 0
        %1519 = vmatpush1.bf16.msra.mxu0 0
        %1520 = vmatprep.subr.bf16.mxu0 0
        %1521 = vmatpush1.bf16.msra.mxu0 0
        %1522 = vmatprep.mubr.bf16.mxu0 0
        %1523 = vmatmul.mubr.bf16.gmra.mrb[0].mxu0 %v1489
        %v1524 = vpop.f32.mrb[0].mxu0
        %v1525 = vadd.f32 0.0, %v1524
        %v1526 = vpop.f32.mrb[0].mxu0
        %v1527 = vadd.f32 0.0, %v1526
        %v1528 = vpop.f32.mrb[0].mxu0
        %v1529 = vadd.f32 0.0, %v1528
        %v1530 = vpop.f32.mrb[0].mxu0
        %v1531 = vadd.f32 0.0, %v1530
        %1532 = vdwg.mxu0
        %1533 = vmatprep.subr.bf16.mxu0 0
        %1534 = vmatpush1.bf16.msra.mxu0 %v372
        %1535 = vmatprep.subr.bf16.mxu0 0
        %1536 = vmatpush1.bf16.msra.mxu0 %v375
        %1537 = vmatprep.subr.bf16.mxu0 0
        %1538 = vmatpush1.bf16.msra.mxu0 %v378
        %1539 = vmatprep.subr.bf16.mxu0 0
        %1540 = vmatpush1.bf16.msra.mxu0 %v381
        %1541 = vmatprep.subr.bf16.mxu0 0
        %1542 = vmatpush1.bf16.msra.mxu0 %v384
        %1543 = vmatprep.subr.bf16.mxu0 0
        %1544 = vmatpush1.bf16.msra.mxu0 %v387
        %1545 = vmatprep.subr.bf16.mxu0 0
        %1546 = vmatpush1.bf16.msra.mxu0 %v390
        %1547 = vmatprep.subr.bf16.mxu0 0
        %1548 = vmatpush1.bf16.msra.mxu0 %v393
        %1549 = vmatprep.subr.bf16.mxu0 0
        %1550 = vmatpush1.bf16.msra.mxu0 0
        %1551 = vmatprep.subr.bf16.mxu0 0
        %1552 = vmatpush1.bf16.msra.mxu0 0
        %1553 = vmatprep.subr.bf16.mxu0 0
        %1554 = vmatpush1.bf16.msra.mxu0 0
        %1555 = vmatprep.subr.bf16.mxu0 0
        %1556 = vmatpush1.bf16.msra.mxu0 0
        %1557 = vmatprep.subr.bf16.mxu0 0
        %1558 = vmatpush1.bf16.msra.mxu0 0
        %1559 = vmatprep.subr.bf16.mxu0 0
        %1560 = vmatpush1.bf16.msra.mxu0 0
        %1561 = vmatprep.subr.bf16.mxu0 0
        %1562 = vmatpush1.bf16.msra.mxu0 0
        %1563 = vmatprep.subr.bf16.mxu0 0
        %1564 = vmatpush1.bf16.msra.mxu0 0
        %1565 = vmatprep.mubr.bf16.mxu0 0
        %1566 = vmatmul.mubr.bf16.gmra.mrb[0].mxu0 %v1489
        %v1567 = vpop.f32.mrb[0].mxu0
        %v1568 = vadd.f32 0.0, %v1567
        %v1569 = vpop.f32.mrb[0].mxu0
        %v1570 = vpop.f32.mrb[0].mxu0
        %v1571 = vadd.f32 0.0, %v1570
        %v1572 = vpop.f32.mrb[0].mxu0
        %1573 = vdwg.mxu0
        %v1574 = vadd.f32 %v1483, %v1525
        %v1575 = vadd.f32 %v1484, %v1527
        %v1576 = vadd.f32 %v1486, %v1529
        %v1577 = vadd.f32 %v1487, %v1531
        %v1578 = vxor.u32 %v1574, 2147483648
        %v1579 = vxor.u32 %v1575, 2147483648
        %v1580 = vxor.u32 %v1576, 2147483648
        %v1581 = vxor.u32 %v1577, 2147483648
        %v1582 = vmul.f32 %v1578, 1.442695
        %v1583 = vpow.pop %v1582
        %v1584 = vmul.f32 %v1579, 1.442695
        %v1585 = vpow.pop %v1584
        %v1586 = vmul.f32 %v1580, 1.442695
        %v1587 = vpow.pop %v1586
        %v1588 = vmul.f32 %v1581, 1.442695
        %v1589 = vpow.pop %v1588
        %v1590 = vadd.f32 %v1583, 1.0
        %v1591 = vadd.f32 %v1585, 1.0
        %v1592 = vadd.f32 %v1587, 1.0
        %v1593 = vadd.f32 %v1589, 1.0
        %v1594 = vrcp.pop %v1590
        %v1595 = vmul.f32 1.0, %v1594
        %v1596 = vrcp.pop %v1591
        %v1597 = vmul.f32 1.0, %v1596
        %v1598 = vrcp.pop %v1592
        %v1599 = vmul.f32 1.0, %v1598
        %v1600 = vrcp.pop %v1593
        %v1601 = vmul.f32 1.0, %v1600
        %v1602 = vadd.f32 %v1568, %v279
        %v1603 = vadd.f32 %v1571, %v280
        %v1604 = vmul.f32 %v1595, %v1602
        %v1605 = vmul.f32 %v1599, %v1603
        %v1606 = vadd.f32 %v1485, %v1604
        %v1607 = vadd.f32 %v1488, %v1605
        %v1608 = vtanh.pop %v1606
        %v1609 = vtanh.pop %v1607
        %v1610 = vsub.f32 %v1480, %v1608
        %v1611 = vsub.f32 %v1481, %v1609
        %v1612 = vmul.f32 %v1597, %v1610
        %v1613 = vmul.f32 %v1601, %v1611
        %v1614 = vadd.f32 %v1608, %v1612
        %v1615 = vadd.f32 %v1609, %v1613
        %s1616 = scalar_lea.vmem %s228, 432
        %v1617 = vld [vmem:[%s1616] sm:$0xff]
        %v1618 = vld [vmem:[%s1616 + $0x8] sm:$0xff]
        %v1619 = vld [vmem:[%s1616 + $0x10] sm:$0xff]
        %v1620 = vld [vmem:[%s1616 + $0x18] sm:$0x3]
        %v1621 = vld [vmem:[%s1616 + $0x20] sm:$0x3]
        %v1622 = vld [vmem:[%s1616 + $0x28] sm:$0x3]
        %v1623 = vpack.c.bf16 %v1615, %v1614
        %1624 = vmatprep.subr.bf16.mxu0 %v371
        %1625 = vmatpush1.bf16.msra.mxu0 %v370
        %1626 = vmatprep.subr.bf16.mxu0 %v374
        %1627 = vmatpush1.bf16.msra.mxu0 %v373
        %1628 = vmatprep.subr.bf16.mxu0 %v377
        %1629 = vmatpush1.bf16.msra.mxu0 %v376
        %1630 = vmatprep.subr.bf16.mxu0 %v380
        %1631 = vmatpush1.bf16.msra.mxu0 %v379
        %1632 = vmatprep.subr.bf16.mxu0 %v383
        %1633 = vmatpush1.bf16.msra.mxu0 %v382
        %1634 = vmatprep.subr.bf16.mxu0 %v386
        %1635 = vmatpush1.bf16.msra.mxu0 %v385
        %1636 = vmatprep.subr.bf16.mxu0 %v389
        %1637 = vmatpush1.bf16.msra.mxu0 %v388
        %1638 = vmatprep.subr.bf16.mxu0 %v392
        %1639 = vmatpush1.bf16.msra.mxu0 %v391
        %1640 = vmatprep.subr.bf16.mxu0 0
        %1641 = vmatpush1.bf16.msra.mxu0 0
        %1642 = vmatprep.subr.bf16.mxu0 0
        %1643 = vmatpush1.bf16.msra.mxu0 0
        %1644 = vmatprep.subr.bf16.mxu0 0
        %1645 = vmatpush1.bf16.msra.mxu0 0
        %1646 = vmatprep.subr.bf16.mxu0 0
        %1647 = vmatpush1.bf16.msra.mxu0 0
        %1648 = vmatprep.subr.bf16.mxu0 0
        %1649 = vmatpush1.bf16.msra.mxu0 0
        %1650 = vmatprep.subr.bf16.mxu0 0
        %1651 = vmatpush1.bf16.msra.mxu0 0
        %1652 = vmatprep.subr.bf16.mxu0 0
        %1653 = vmatpush1.bf16.msra.mxu0 0
        %1654 = vmatprep.subr.bf16.mxu0 0
        %1655 = vmatpush1.bf16.msra.mxu0 0
        %1656 = vmatprep.mubr.bf16.mxu0 0
        %1657 = vmatmul.mubr.bf16.gmra.mrb[0].mxu0 %v1623
        %v1658 = vpop.f32.mrb[0].mxu0
        %v1659 = vadd.f32 0.0, %v1658
        %v1660 = vpop.f32.mrb[0].mxu0
        %v1661 = vadd.f32 0.0, %v1660
        %v1662 = vpop.f32.mrb[0].mxu0
        %v1663 = vadd.f32 0.0, %v1662
        %v1664 = vpop.f32.mrb[0].mxu0
        %v1665 = vadd.f32 0.0, %v1664
        %1666 = vdwg.mxu0
        %1667 = vmatprep.subr.bf16.mxu0 0
        %1668 = vmatpush1.bf16.msra.mxu0 %v372
        %1669 = vmatprep.subr.bf16.mxu0 0
        %1670 = vmatpush1.bf16.msra.mxu0 %v375
        %1671 = vmatprep.subr.bf16.mxu0 0
        %1672 = vmatpush1.bf16.msra.mxu0 %v378
        %1673 = vmatprep.subr.bf16.mxu0 0
        %1674 = vmatpush1.bf16.msra.mxu0 %v381
        %1675 = vmatprep.subr.bf16.mxu0 0
        %1676 = vmatpush1.bf16.msra.mxu0 %v384
        %1677 = vmatprep.subr.bf16.mxu0 0
        %1678 = vmatpush1.bf16.msra.mxu0 %v387
        %1679 = vmatprep.subr.bf16.mxu0 0
        %1680 = vmatpush1.bf16.msra.mxu0 %v390
        %1681 = vmatprep.subr.bf16.mxu0 0
        %1682 = vmatpush1.bf16.msra.mxu0 %v393
        %1683 = vmatprep.subr.bf16.mxu0 0
        %1684 = vmatpush1.bf16.msra.mxu0 0
        %1685 = vmatprep.subr.bf16.mxu0 0
        %1686 = vmatpush1.bf16.msra.mxu0 0
        %1687 = vmatprep.subr.bf16.mxu0 0
        %1688 = vmatpush1.bf16.msra.mxu0 0
        %1689 = vmatprep.subr.bf16.mxu0 0
        %1690 = vmatpush1.bf16.msra.mxu0 0
        %1691 = vmatprep.subr.bf16.mxu0 0
        %1692 = vmatpush1.bf16.msra.mxu0 0
        %1693 = vmatprep.subr.bf16.mxu0 0
        %1694 = vmatpush1.bf16.msra.mxu0 0
        %1695 = vmatprep.subr.bf16.mxu0 0
        %1696 = vmatpush1.bf16.msra.mxu0 0
        %1697 = vmatprep.subr.bf16.mxu0 0
        %1698 = vmatpush1.bf16.msra.mxu0 0
        %1699 = vmatprep.mubr.bf16.mxu0 0
        %1700 = vmatmul.mubr.bf16.gmra.mrb[0].mxu0 %v1623
        %v1701 = vpop.f32.mrb[0].mxu0
        %v1702 = vadd.f32 0.0, %v1701
        %v1703 = vpop.f32.mrb[0].mxu0
        %v1704 = vpop.f32.mrb[0].mxu0
        %v1705 = vadd.f32 0.0, %v1704
        %v1706 = vpop.f32.mrb[0].mxu0
        %1707 = vdwg.mxu0
        %v1708 = vadd.f32 %v1617, %v1659
        %v1709 = vadd.f32 %v1618, %v1661
        %v1710 = vadd.f32 %v1620, %v1663
        %v1711 = vadd.f32 %v1621, %v1665
        %v1712 = vxor.u32 %v1708, 2147483648
        %v1713 = vxor.u32 %v1709, 2147483648
        %v1714 = vxor.u32 %v1710, 2147483648
        %v1715 = vxor.u32 %v1711, 2147483648
        %v1716 = vmul.f32 %v1712, 1.442695
        %v1717 = vpow.pop %v1716
        %v1718 = vmul.f32 %v1713, 1.442695
        %v1719 = vpow.pop %v1718
        %v1720 = vmul.f32 %v1714, 1.442695
        %v1721 = vpow.pop %v1720
        %v1722 = vmul.f32 %v1715, 1.442695
        %v1723 = vpow.pop %v1722
        %v1724 = vadd.f32 %v1717, 1.0
        %v1725 = vadd.f32 %v1719, 1.0
        %v1726 = vadd.f32 %v1721, 1.0
        %v1727 = vadd.f32 %v1723, 1.0
        %v1728 = vrcp.pop %v1724
        %v1729 = vmul.f32 1.0, %v1728
        %v1730 = vrcp.pop %v1725
        %v1731 = vmul.f32 1.0, %v1730
        %v1732 = vrcp.pop %v1726
        %v1733 = vmul.f32 1.0, %v1732
        %v1734 = vrcp.pop %v1727
        %v1735 = vmul.f32 1.0, %v1734
        %v1736 = vadd.f32 %v1702, %v279
        %v1737 = vadd.f32 %v1705, %v280
        %v1738 = vmul.f32 %v1729, %v1736
        %v1739 = vmul.f32 %v1733, %v1737
        %v1740 = vadd.f32 %v1619, %v1738
        %v1741 = vadd.f32 %v1622, %v1739
        %v1742 = vtanh.pop %v1740
        %v1743 = vtanh.pop %v1741
        %v1744 = vsub.f32 %v1614, %v1742
        %v1745 = vsub.f32 %v1615, %v1743
        %v1746 = vmul.f32 %v1731, %v1744
        %v1747 = vmul.f32 %v1735, %v1745
        %v1748 = vadd.f32 %v1742, %v1746
        %v1749 = vadd.f32 %v1743, %v1747
        %1750 = vst [vmem:[#allocation2] sm:$0xff] %v1748
        %1751 = vst [vmem:[#allocation2 + $0x8] sm:$0x3] %v1749
        %p1752 = scmp.eq.s32.totalorder %s22, 1
        // Predicated region
        $region37: #{tpu_custom_call.1} parent=31 // pred_check
          %p1753 = pneg %p1752
        $region38: #{tpu_custom_call.1} parent=31 // pred_check_branch
          %1755 = sbr.rel (%p1753) target = $region40
        $region39: #{tpu_custom_call.1} parent=31 // pred_region
          %1756 = vst [vmem:[%s218] sm:$0xff] %v1748
          %1757 = vst [vmem:[%s218 + $0x8] sm:$0x3] %v1749
        $region40: #{tpu_custom_call.1} parent=31 // pred_fallthru
          _
        %s1758 = sand.u32 %s117, 1
        %s1759 = scalar_lea.sflag [#allocation4], %s1758
        %s1760 = sand.u32 %s117, 1
        %s1761 = smul.addr %s1760, 16
        %s1762 = scalar_lea.vmem [#allocation3], %s1761
        // Predicated region
        $region41: #{tpu_custom_call.1} parent=31 // pred_check
          %p1763 = pneg %p127
        $region42: #{tpu_custom_call.1} parent=31 // pred_check_branch
          %1765 = sbr.rel (%p1763) target = $region44
        $region43: #{tpu_custom_call.1} parent=31 // pred_region
          %s1767 = ssub.s32 256, 256
          %1768 = vsyncadd %s1759, %s1767
          %s1769 = smul.addr %s21, 128
          %s1770 = scalar_lea.hbm %s3, %s1769
          %s1771 = sshll.u32 %s1762, 4
          %s1772 = int_to_ptr.vmem [resolvable:$true] %s1771
          %1777 = dma.vmem_to_hbm [thread:$0]  %s1772, 256, %s1770, %s1759, 128, 256, 8
        $region44: #{tpu_custom_call.1} parent=31 // pred_fallthru
          _
      $region32: #{tpu_custom_call.1} parent=5 // pred_fallthru
        _
      %p1778 = scmp.le.s32.totalorder 2, %s12
      // Predicated region
      $region45: #{tpu_custom_call.1} parent=5 // pred_check
        %p1779 = pneg %p1778
      $region46: #{tpu_custom_call.1} parent=5 // pred_check_branch
        %1781 = sbr.rel (%p1779) target = $region48
      $region47: #{tpu_custom_call.1} parent=5 // pred_region
        %s1782 = ssub.s32 %s12, 2
        // Predicated region
        $region49: #{tpu_custom_call.1} parent=47 // pred_check
          %p1783 = pneg %p133
        $region50: #{tpu_custom_call.1} parent=47 // pred_check_branch
          %1785 = sbr.rel (%p1783) target = $region52
        $region51: #{tpu_custom_call.1} parent=47 // pred_region
          %s1786 = sand.u32 %s118, 1
          %s1787 = scalar_lea.sflag [#allocation4], %s1786
          %s1788 = sand.u32 %s118, 1
          %s1789 = smul.addr %s1788, 16
          %s1790 = scalar_lea.vmem [#allocation3], %s1789
          %1791 = dma.done %s1787, 256
        $region52: #{tpu_custom_call.1} parent=47 // pred_fallthru
          _
      $region48: #{tpu_custom_call.1} parent=5 // pred_fallthru
        _
    $region6: #{tpu_custom_call.1} parent=1 // loop_footer
      %s16 = sadd.s32 1, %s12
    $region7: #{tpu_custom_call.1} parent=1 // loop_footer_branch
      %11 = sbr.rel target = $region3
    $region8: #{tpu_custom_call.1} parent=1 // loop_exit
      _
    %1792 = vsyncpa [#allocation4], 1
    %s1793 = scalar_lea.sflag [#allocation4], 1
    %1794 = vsyncpa %s1793, 1

</llo_original>
